<compile_context>
chip_gen: v6e
topology: v6e:2x2x1
jax: 0.10.0
libtpu: 0.0.40
codegen_flags: <defaults>
</compile_context>

<pallas_src>
import jax
import jax.numpy as jnp
from jax import lax
from jax.experimental import pallas as pl
from jax.experimental.pallas import tpu as pltpu


def memory_kernel(x_ref, wih_ref, whh_ref, b_ref, wfc_ref, bfc_ref, y_ref):
    """Full T-step LSTM + FC head for a Bc-row batch slab in ONE invocation.

    x_ref   : (T, Bc, I)  f32   time-major input slab
    wih_ref : (I, 4H)     f32   W_ih^T     (g-gate columns pre-scaled by 2)
    whh_ref : (H, 4H)     bf16  W_hh^T     (g-gate columns pre-scaled by 2)
    b_ref   : (1, 4H)     f32   b_ih+b_hh  (g-gate columns pre-scaled by 2)
    wfc_ref : (T*H, T*L)  f32   block-diag(W_fc^T) -> FC over all steps at once
    bfc_ref : (1, T*L)    f32   b_fc tiled T times
    y_ref   : (Bc, T*L)   f32   lane-dense output slab
    """
    T = x_ref.shape[0]
    Bc = x_ref.shape[1]
    H = whh_ref.shape[0]

    wih = wih_ref[...]
    whh = whh_ref[...]                      # bf16, loaded once
    b = b_ref[...]

    # Hoisted input projection (+ fused bias) for every step.  Independent of
    # the recurrent state, so entirely off the serial dependence chain.
    gx = [jnp.dot(x_ref[t], wih, preferred_element_type=jnp.float32) + b
          for t in range(T)]                # T x (Bc, 4H)

    h = jnp.zeros((Bc, H), jnp.float32)
    c = jnp.zeros((Bc, H), jnp.float32)
    hs = []

    # Fully-unrolled recurrence (T small & static).  Only the bf16 h @ W_hh^T
    # GEMM + gate math sit on the serial critical path.
    # TODO(synk): if the compiler re-pushes the constant W_hh^T into the MXU each
    # step, pltpu.matmul_push_rhs / matmul_acc_lhs could pin it across the unroll.
    for t in range(T):
        gates = gx[t] + jnp.dot(h.astype(jnp.bfloat16), whh,
                                preferred_element_type=jnp.float32)
        sig = jax.nn.sigmoid(gates)                 # ONE full-width EUP pass
        i_g = sig[:, 0 * H:1 * H]
        f_g = sig[:, 1 * H:2 * H]
        g_g = 2.0 * sig[:, 2 * H:3 * H] - 1.0       # tanh(x) = 2*sigmoid(2x) - 1
        o_g = sig[:, 3 * H:4 * H]
        c = f_g * c + i_g * g_g
        h = o_g * jnp.tanh(c)                       # only remaining tanh: H lanes
        hs.append(h)                                # stays in registers

    # Batched FC head: one (Bc, T*H) @ (T*H, T*L) matmul, one unmasked
    # lane-dense store.
    hs_wide = jnp.concatenate(hs, axis=1)           # (Bc, T*H)
    y = jnp.dot(hs_wide, wfc_ref[...],
                preferred_element_type=jnp.float32) + bfc_ref[...]
    y_ref[...] = y.astype(y_ref.dtype)


def memory_forward(states, params, *, num_cores=1):
    """states: (B, T, I) float32 (batch_first) -> (B, T, n_latents) float32.

    num_cores=1 is right for v5e/v6e (single TensorCore).  On v7x, pass
    num_cores=2 to split the batch across both cores (requires B % num_cores == 0
    and B // num_cores respecting the (8,128) block constraint or equalling B).
    """
    wih_t, whh_t, bias, wfc_t, bfc = params
    B, T, I = states.shape
    H = whh_t.shape[0]
    L = wfc_t.shape[1]
    assert B % num_cores == 0
    Bc = B // num_cores

    # tanh(x) = 2*sigmoid(2x) - 1: pre-scale the g-gate columns by 2 so the
    # kernel needs a single sigmoid pass per step instead of sigmoid + tanh.
    scale = jnp.concatenate([
        jnp.ones((2 * H,), jnp.float32),
        jnp.full((H,), 2.0, jnp.float32),
        jnp.ones((H,), jnp.float32),
    ])
    wih_s = wih_t * scale
    whh_s = (whh_t * scale).astype(jnp.bfloat16)    # bf16 on the recurrent path
    b_s = bias * scale

    # Block-diagonal FC weight: FC over all T steps in one matmul; the output
    # slab (Bc, T*L) is lane-dense (128 lanes for T=8, L=16).
    wfc_big = jnp.kron(jnp.eye(T, dtype=jnp.float32), wfc_t)   # (T*H, T*L)
    bfc_big = jnp.tile(bfc, (1, T))                             # (1, T*L)

    x_tm = jnp.transpose(states, (1, 0, 2))         # (T, B, I) time-major

    y2d = pl.pallas_call(
        memory_kernel,
        out_shape=jax.ShapeDtypeStruct((B, T * L), jnp.float32),
        grid_spec=pltpu.PrefetchScalarGridSpec(
            num_scalar_prefetch=0,
            grid=(num_cores,),                                   # 1 (or #TCs)
            in_specs=[
                pl.BlockSpec((T, Bc, I), lambda g: (0, g, 0)),   # x (time-major)
                pl.BlockSpec((I, 4 * H), lambda g: (0, 0)),      # W_ih^T (scaled)
                pl.BlockSpec((H, 4 * H), lambda g: (0, 0)),      # W_hh^T bf16
                pl.BlockSpec((1, 4 * H), lambda g: (0, 0)),      # bias (scaled)
                pl.BlockSpec((T * H, T * L), lambda g: (0, 0)),  # block-diag W_fc^T
                pl.BlockSpec((1, T * L), lambda g: (0, 0)),      # tiled b_fc
            ],
            out_specs=pl.BlockSpec((Bc, T * L), lambda g: (g, 0)),
        ),
        compiler_params=pltpu.CompilerParams(
            dimension_semantics=("parallel",),
        ),
    )(x_tm, wih_s, whh_s, b_s, wfc_big, bfc_big)
    return y2d.reshape(B, T, L)


def memory_reference(states, params):
    """Pure-JAX f32 reference (lax.scan) matching PyTorch nn.LSTM semantics."""
    wih_t, whh_t, bias, wfc_t, bfc = params
    B = states.shape[0]
    H = whh_t.shape[0]

    def step(carry, x_t):
        h, c = carry
        gates = x_t @ wih_t + h @ whh_t + bias
        i_g = jax.nn.sigmoid(gates[:, 0 * H:1 * H])
        f_g = jax.nn.sigmoid(gates[:, 1 * H:2 * H])
        g_g = jnp.tanh(gates[:, 2 * H:3 * H])
        o_g = jax.nn.sigmoid(gates[:, 3 * H:4 * H])
        c_new = f_g * c + i_g * g_g
        h_new = o_g * jnp.tanh(c_new)
        return (h_new, c_new), h_new

    h0 = jnp.zeros((B, H), jnp.float32)
    c0 = jnp.zeros((B, H), jnp.float32)
    _, hs = lax.scan(step, (h0, c0), jnp.transpose(states, (1, 0, 2)))
    y = hs @ wfc_t + bfc                      # (T, B, L)
    return jnp.transpose(y, (1, 0, 2))


def init_params(key, n_latents, n_actions, hidden_size):
    """Deterministic init mirroring PyTorch nn.LSTM / nn.Linear shapes."""
    I = n_latents + n_actions
    H = hidden_size
    L = n_latents
    k = 1.0 / jnp.sqrt(jnp.float32(H))
    keys = jax.random.split(key, 6)
    w_ih = jax.random.uniform(keys[0], (4 * H, I), jnp.float32, -k, k)
    w_hh = jax.random.uniform(keys[1], (4 * H, H), jnp.float32, -k, k)
    b_ih = jax.random.uniform(keys[2], (4 * H,), jnp.float32, -k, k)
    b_hh = jax.random.uniform(keys[3], (4 * H,), jnp.float32, -k, k)
    w_fc = jax.random.uniform(keys[4], (L, H), jnp.float32, -k, k)
    b_fc = jax.random.uniform(keys[5], (L,), jnp.float32, -k, k)
    return (
        w_ih.T,                            # (I, 4H)
        w_hh.T,                            # (H, 4H)
        (b_ih + b_hh).reshape(1, 4 * H),   # (1, 4H)
        w_fc.T,                            # (H, L)
        b_fc.reshape(1, L),                # (1, L)
    )


if __name__ == "__main__":
    # Small config consistent with the module: n_latents=16, n_actions=4,
    # hidden_size=32, batch=2, seq=8.
    n_latents, n_actions, hidden_size = 16, 4, 32
    B, T = 2, 8
    I = n_latents + n_actions

    key = jax.random.PRNGKey(0)
    pkey, xkey = jax.random.split(key)
    params = init_params(pkey, n_latents, n_actions, hidden_size)
    states = jax.random.normal(xkey, (B, T, I), jnp.float32)

    y = memory_forward(states, params)
    y = jax.block_until_ready(y)

    y_ref = memory_reference(states, params)
    assert y.shape == (B, T, n_latents)
    # bf16 recurrent weights (f32 accumulate) -> relaxed tolerance vs. the f32
    # reference (observed error ~1e-3; bound kept generous).
    assert jnp.allclose(y, y_ref, atol=2e-2, rtol=2e-2), "mismatch vs reference"

    print("KERNEL_OK")
</pallas_src>

<mosaic_0001>
module attributes {stable_mosaic.version = 11 : i64} {
  func.func @memory_kernel(%arg0: i32, %arg1: memref<8x2x20xf32, #tpu.memory_space<vmem>>, %arg2: memref<20x128xf32, #tpu.memory_space<vmem>>, %arg3: memref<32x128xbf16, #tpu.memory_space<vmem>>, %arg4: memref<1x128xf32, #tpu.memory_space<vmem>>, %arg5: memref<256x128xf32, #tpu.memory_space<vmem>>, %arg6: memref<1x128xf32, #tpu.memory_space<vmem>>, %arg7: memref<2x128xf32, #tpu.memory_space<vmem>>) attributes {dimension_semantics = [#tpu.dimension_semantics<parallel>], iteration_bounds = array<i64: 1>, scalar_prefetch = 0 : i64, scratch_operands = 0 : i64, tpu.core_type = #tpu.core_type<tc>, window_params = [{transform_indices = @transform_0, window_bounds = array<i64: 8, 2, 20>}, {pipeline_mode = #tpu.pipeline_mode<synchronous>, transform_indices = @transform_1, window_bounds = array<i64: 20, 128>}, {pipeline_mode = #tpu.pipeline_mode<synchronous>, transform_indices = @transform_2, window_bounds = array<i64: 32, 128>}, {pipeline_mode = #tpu.pipeline_mode<synchronous>, transform_indices = @transform_3, window_bounds = array<i64: 1, 128>}, {pipeline_mode = #tpu.pipeline_mode<synchronous>, transform_indices = @transform_4, window_bounds = array<i64: 256, 128>}, {pipeline_mode = #tpu.pipeline_mode<synchronous>, transform_indices = @transform_5, window_bounds = array<i64: 1, 128>}, {transform_indices = @transform_6, window_bounds = array<i64: 2, 128>}]} {
    %c0 = arith.constant 0 : index
    %c0_0 = arith.constant 0 : index
    %0 = vector.load %arg2[%c0, %c0_0] : memref<20x128xf32, #tpu.memory_space<vmem>>, vector<20x128xf32>
    %c0_1 = arith.constant 0 : index
    %c0_2 = arith.constant 0 : index
    %1 = vector.load %arg3[%c0_1, %c0_2] : memref<32x128xbf16, #tpu.memory_space<vmem>>, vector<32x128xbf16>
    %c0_3 = arith.constant 0 : index
    %c0_4 = arith.constant 0 : index
    %2 = vector.load %arg4[%c0_3, %c0_4] : memref<1x128xf32, #tpu.memory_space<vmem>>, vector<1x128xf32>
    %c0_5 = arith.constant 0 : index
    %c0_6 = arith.constant 0 : index
    %c0_7 = arith.constant 0 : index
    %3 = vector.load %arg1[%c0_5, %c0_6, %c0_7] : memref<8x2x20xf32, #tpu.memory_space<vmem>>, vector<1x2x20xf32>
    %4 = vector.shape_cast %3 : vector<1x2x20xf32> to vector<2x20xf32>
    %cst = arith.constant dense<0.000000e+00> : vector<2x128xf32>
    %5 = tpu.matmul %4, %0, %cst {dimension_numbers = #tpu.dot_dimension_numbers<[1], [0], [0], [1], [0, 0, 1, 1], [], []>} : vector<2x20xf32>, vector<20x128xf32>, vector<2x128xf32> -> vector<2x128xf32>
    %6 = vector.broadcast %2 : vector<1x128xf32> to vector<2x128xf32>
    %7 = arith.addf %5, %6 : vector<2x128xf32>
    %c1 = arith.constant 1 : index
    %c0_8 = arith.constant 0 : index
    %c0_9 = arith.constant 0 : index
    %8 = vector.load %arg1[%c1, %c0_8, %c0_9] : memref<8x2x20xf32, #tpu.memory_space<vmem>>, vector<1x2x20xf32>
    %9 = vector.shape_cast %8 : vector<1x2x20xf32> to vector<2x20xf32>
    %cst_10 = arith.constant dense<0.000000e+00> : vector<2x128xf32>
    %10 = tpu.matmul %9, %0, %cst_10 {dimension_numbers = #tpu.dot_dimension_numbers<[1], [0], [0], [1], [0, 0, 1, 1], [], []>} : vector<2x20xf32>, vector<20x128xf32>, vector<2x128xf32> -> vector<2x128xf32>
    %11 = vector.broadcast %2 : vector<1x128xf32> to vector<2x128xf32>
    %12 = arith.addf %10, %11 : vector<2x128xf32>
    %c2 = arith.constant 2 : index
    %c0_11 = arith.constant 0 : index
    %c0_12 = arith.constant 0 : index
    %13 = vector.load %arg1[%c2, %c0_11, %c0_12] : memref<8x2x20xf32, #tpu.memory_space<vmem>>, vector<1x2x20xf32>
    %14 = vector.shape_cast %13 : vector<1x2x20xf32> to vector<2x20xf32>
    %cst_13 = arith.constant dense<0.000000e+00> : vector<2x128xf32>
    %15 = tpu.matmul %14, %0, %cst_13 {dimension_numbers = #tpu.dot_dimension_numbers<[1], [0], [0], [1], [0, 0, 1, 1], [], []>} : vector<2x20xf32>, vector<20x128xf32>, vector<2x128xf32> -> vector<2x128xf32>
    %16 = vector.broadcast %2 : vector<1x128xf32> to vector<2x128xf32>
    %17 = arith.addf %15, %16 : vector<2x128xf32>
    %c3 = arith.constant 3 : index
    %c0_14 = arith.constant 0 : index
    %c0_15 = arith.constant 0 : index
    %18 = vector.load %arg1[%c3, %c0_14, %c0_15] : memref<8x2x20xf32, #tpu.memory_space<vmem>>, vector<1x2x20xf32>
    %19 = vector.shape_cast %18 : vector<1x2x20xf32> to vector<2x20xf32>
    %cst_16 = arith.constant dense<0.000000e+00> : vector<2x128xf32>
    %20 = tpu.matmul %19, %0, %cst_16 {dimension_numbers = #tpu.dot_dimension_numbers<[1], [0], [0], [1], [0, 0, 1, 1], [], []>} : vector<2x20xf32>, vector<20x128xf32>, vector<2x128xf32> -> vector<2x128xf32>
    %21 = vector.broadcast %2 : vector<1x128xf32> to vector<2x128xf32>
    %22 = arith.addf %20, %21 : vector<2x128xf32>
    %c4 = arith.constant 4 : index
    %c0_17 = arith.constant 0 : index
    %c0_18 = arith.constant 0 : index
    %23 = vector.load %arg1[%c4, %c0_17, %c0_18] : memref<8x2x20xf32, #tpu.memory_space<vmem>>, vector<1x2x20xf32>
    %24 = vector.shape_cast %23 : vector<1x2x20xf32> to vector<2x20xf32>
    %cst_19 = arith.constant dense<0.000000e+00> : vector<2x128xf32>
    %25 = tpu.matmul %24, %0, %cst_19 {dimension_numbers = #tpu.dot_dimension_numbers<[1], [0], [0], [1], [0, 0, 1, 1], [], []>} : vector<2x20xf32>, vector<20x128xf32>, vector<2x128xf32> -> vector<2x128xf32>
    %26 = vector.broadcast %2 : vector<1x128xf32> to vector<2x128xf32>
    %27 = arith.addf %25, %26 : vector<2x128xf32>
    %c5 = arith.constant 5 : index
    %c0_20 = arith.constant 0 : index
    %c0_21 = arith.constant 0 : index
    %28 = vector.load %arg1[%c5, %c0_20, %c0_21] : memref<8x2x20xf32, #tpu.memory_space<vmem>>, vector<1x2x20xf32>
    %29 = vector.shape_cast %28 : vector<1x2x20xf32> to vector<2x20xf32>
    %cst_22 = arith.constant dense<0.000000e+00> : vector<2x128xf32>
    %30 = tpu.matmul %29, %0, %cst_22 {dimension_numbers = #tpu.dot_dimension_numbers<[1], [0], [0], [1], [0, 0, 1, 1], [], []>} : vector<2x20xf32>, vector<20x128xf32>, vector<2x128xf32> -> vector<2x128xf32>
    %31 = vector.broadcast %2 : vector<1x128xf32> to vector<2x128xf32>
    %32 = arith.addf %30, %31 : vector<2x128xf32>
    %c6 = arith.constant 6 : index
    %c0_23 = arith.constant 0 : index
    %c0_24 = arith.constant 0 : index
    %33 = vector.load %arg1[%c6, %c0_23, %c0_24] : memref<8x2x20xf32, #tpu.memory_space<vmem>>, vector<1x2x20xf32>
    %34 = vector.shape_cast %33 : vector<1x2x20xf32> to vector<2x20xf32>
    %cst_25 = arith.constant dense<0.000000e+00> : vector<2x128xf32>
    %35 = tpu.matmul %34, %0, %cst_25 {dimension_numbers = #tpu.dot_dimension_numbers<[1], [0], [0], [1], [0, 0, 1, 1], [], []>} : vector<2x20xf32>, vector<20x128xf32>, vector<2x128xf32> -> vector<2x128xf32>
    %36 = vector.broadcast %2 : vector<1x128xf32> to vector<2x128xf32>
    %37 = arith.addf %35, %36 : vector<2x128xf32>
    %c7 = arith.constant 7 : index
    %c0_26 = arith.constant 0 : index
    %c0_27 = arith.constant 0 : index
    %38 = vector.load %arg1[%c7, %c0_26, %c0_27] : memref<8x2x20xf32, #tpu.memory_space<vmem>>, vector<1x2x20xf32>
    %39 = vector.shape_cast %38 : vector<1x2x20xf32> to vector<2x20xf32>
    %cst_28 = arith.constant dense<0.000000e+00> : vector<2x128xf32>
    %40 = tpu.matmul %39, %0, %cst_28 {dimension_numbers = #tpu.dot_dimension_numbers<[1], [0], [0], [1], [0, 0, 1, 1], [], []>} : vector<2x20xf32>, vector<20x128xf32>, vector<2x128xf32> -> vector<2x128xf32>
    %41 = vector.broadcast %2 : vector<1x128xf32> to vector<2x128xf32>
    %42 = arith.addf %40, %41 : vector<2x128xf32>
    %cst_29 = arith.constant 0.000000e+00 : f32
    %43 = vector.broadcast %cst_29 : f32 to vector<2x32xf32>
    %cst_30 = arith.constant 0.000000e+00 : f32
    %44 = vector.broadcast %cst_30 : f32 to vector<2x32xf32>
    %45 = arith.truncf %43 : vector<2x32xf32> to vector<2x32xbf16>
    %cst_31 = arith.constant dense<0.000000e+00> : vector<2x128xf32>
    %46 = tpu.matmul %45, %1, %cst_31 {dimension_numbers = #tpu.dot_dimension_numbers<[1], [0], [0], [1], [0, 0, 1, 1], [], []>} : vector<2x32xbf16>, vector<32x128xbf16>, vector<2x128xf32> -> vector<2x128xf32>
    %47 = arith.addf %7, %46 : vector<2x128xf32>
    %48 = arith.negf %47 : vector<2x128xf32>
    %49 = math.exp %48 : vector<2x128xf32>
    %cst_32 = arith.constant 1.000000e+00 : f32
    %50 = vector.broadcast %cst_32 : f32 to vector<2x128xf32>
    %51 = arith.addf %50, %49 : vector<2x128xf32>
    %52 = arith.divf %50, %51 : vector<2x128xf32>
    %53 = vector.extract_strided_slice %52 {offsets = [0, 0], sizes = [2, 32], strides = [1, 1]} : vector<2x128xf32> to vector<2x32xf32>
    %54 = vector.extract_strided_slice %52 {offsets = [0, 32], sizes = [2, 32], strides = [1, 1]} : vector<2x128xf32> to vector<2x32xf32>
    %55 = vector.extract_strided_slice %52 {offsets = [0, 64], sizes = [2, 32], strides = [1, 1]} : vector<2x128xf32> to vector<2x32xf32>
    %cst_33 = arith.constant 2.000000e+00 : f32
    %56 = vector.broadcast %cst_33 : f32 to vector<2x32xf32>
    %57 = arith.mulf %56, %55 : vector<2x32xf32>
    %cst_34 = arith.constant 1.000000e+00 : f32
    %58 = vector.broadcast %cst_34 : f32 to vector<2x32xf32>
    %59 = arith.subf %57, %58 : vector<2x32xf32>
    %60 = vector.extract_strided_slice %52 {offsets = [0, 96], sizes = [2, 32], strides = [1, 1]} : vector<2x128xf32> to vector<2x32xf32>
    %61 = arith.mulf %54, %44 : vector<2x32xf32>
    %62 = arith.mulf %53, %59 : vector<2x32xf32>
    %63 = arith.addf %61, %62 : vector<2x32xf32>
    %64 = math.tanh %63 : vector<2x32xf32>
    %65 = arith.mulf %60, %64 : vector<2x32xf32>
    %66 = arith.truncf %65 : vector<2x32xf32> to vector<2x32xbf16>
    %cst_35 = arith.constant dense<0.000000e+00> : vector<2x128xf32>
    %67 = tpu.matmul %66, %1, %cst_35 {dimension_numbers = #tpu.dot_dimension_numbers<[1], [0], [0], [1], [0, 0, 1, 1], [], []>} : vector<2x32xbf16>, vector<32x128xbf16>, vector<2x128xf32> -> vector<2x128xf32>
    %68 = arith.addf %12, %67 : vector<2x128xf32>
    %69 = arith.negf %68 : vector<2x128xf32>
    %70 = math.exp %69 : vector<2x128xf32>
    %cst_36 = arith.constant 1.000000e+00 : f32
    %71 = vector.broadcast %cst_36 : f32 to vector<2x128xf32>
    %72 = arith.addf %71, %70 : vector<2x128xf32>
    %73 = arith.divf %71, %72 : vector<2x128xf32>
    %74 = vector.extract_strided_slice %73 {offsets = [0, 0], sizes = [2, 32], strides = [1, 1]} : vector<2x128xf32> to vector<2x32xf32>
    %75 = vector.extract_strided_slice %73 {offsets = [0, 32], sizes = [2, 32], strides = [1, 1]} : vector<2x128xf32> to vector<2x32xf32>
    %76 = vector.extract_strided_slice %73 {offsets = [0, 64], sizes = [2, 32], strides = [1, 1]} : vector<2x128xf32> to vector<2x32xf32>
    %cst_37 = arith.constant 2.000000e+00 : f32
    %77 = vector.broadcast %cst_37 : f32 to vector<2x32xf32>
    %78 = arith.mulf %77, %76 : vector<2x32xf32>
    %cst_38 = arith.constant 1.000000e+00 : f32
    %79 = vector.broadcast %cst_38 : f32 to vector<2x32xf32>
    %80 = arith.subf %78, %79 : vector<2x32xf32>
    %81 = vector.extract_strided_slice %73 {offsets = [0, 96], sizes = [2, 32], strides = [1, 1]} : vector<2x128xf32> to vector<2x32xf32>
    %82 = arith.mulf %75, %63 : vector<2x32xf32>
    %83 = arith.mulf %74, %80 : vector<2x32xf32>
    %84 = arith.addf %82, %83 : vector<2x32xf32>
    %85 = math.tanh %84 : vector<2x32xf32>
    %86 = arith.mulf %81, %85 : vector<2x32xf32>
    %87 = arith.truncf %86 : vector<2x32xf32> to vector<2x32xbf16>
    %cst_39 = arith.constant dense<0.000000e+00> : vector<2x128xf32>
    %88 = tpu.matmul %87, %1, %cst_39 {dimension_numbers = #tpu.dot_dimension_numbers<[1], [0], [0], [1], [0, 0, 1, 1], [], []>} : vector<2x32xbf16>, vector<32x128xbf16>, vector<2x128xf32> -> vector<2x128xf32>
    %89 = arith.addf %17, %88 : vector<2x128xf32>
    %90 = arith.negf %89 : vector<2x128xf32>
    %91 = math.exp %90 : vector<2x128xf32>
    %cst_40 = arith.constant 1.000000e+00 : f32
    %92 = vector.broadcast %cst_40 : f32 to vector<2x128xf32>
    %93 = arith.addf %92, %91 : vector<2x128xf32>
    %94 = arith.divf %92, %93 : vector<2x128xf32>
    %95 = vector.extract_strided_slice %94 {offsets = [0, 0], sizes = [2, 32], strides = [1, 1]} : vector<2x128xf32> to vector<2x32xf32>
    %96 = vector.extract_strided_slice %94 {offsets = [0, 32], sizes = [2, 32], strides = [1, 1]} : vector<2x128xf32> to vector<2x32xf32>
    %97 = vector.extract_strided_slice %94 {offsets = [0, 64], sizes = [2, 32], strides = [1, 1]} : vector<2x128xf32> to vector<2x32xf32>
    %cst_41 = arith.constant 2.000000e+00 : f32
    %98 = vector.broadcast %cst_41 : f32 to vector<2x32xf32>
    %99 = arith.mulf %98, %97 : vector<2x32xf32>
    %cst_42 = arith.constant 1.000000e+00 : f32
    %100 = vector.broadcast %cst_42 : f32 to vector<2x32xf32>
    %101 = arith.subf %99, %100 : vector<2x32xf32>
    %102 = vector.extract_strided_slice %94 {offsets = [0, 96], sizes = [2, 32], strides = [1, 1]} : vector<2x128xf32> to vector<2x32xf32>
    %103 = arith.mulf %96, %84 : vector<2x32xf32>
    %104 = arith.mulf %95, %101 : vector<2x32xf32>
    %105 = arith.addf %103, %104 : vector<2x32xf32>
    %106 = math.tanh %105 : vector<2x32xf32>
    %107 = arith.mulf %102, %106 : vector<2x32xf32>
    %108 = arith.truncf %107 : vector<2x32xf32> to vector<2x32xbf16>
    %cst_43 = arith.constant dense<0.000000e+00> : vector<2x128xf32>
    %109 = tpu.matmul %108, %1, %cst_43 {dimension_numbers = #tpu.dot_dimension_numbers<[1], [0], [0], [1], [0, 0, 1, 1], [], []>} : vector<2x32xbf16>, vector<32x128xbf16>, vector<2x128xf32> -> vector<2x128xf32>
    %110 = arith.addf %22, %109 : vector<2x128xf32>
    %111 = arith.negf %110 : vector<2x128xf32>
    %112 = math.exp %111 : vector<2x128xf32>
    %cst_44 = arith.constant 1.000000e+00 : f32
    %113 = vector.broadcast %cst_44 : f32 to vector<2x128xf32>
    %114 = arith.addf %113, %112 : vector<2x128xf32>
    %115 = arith.divf %113, %114 : vector<2x128xf32>
    %116 = vector.extract_strided_slice %115 {offsets = [0, 0], sizes = [2, 32], strides = [1, 1]} : vector<2x128xf32> to vector<2x32xf32>
    %117 = vector.extract_strided_slice %115 {offsets = [0, 32], sizes = [2, 32], strides = [1, 1]} : vector<2x128xf32> to vector<2x32xf32>
    %118 = vector.extract_strided_slice %115 {offsets = [0, 64], sizes = [2, 32], strides = [1, 1]} : vector<2x128xf32> to vector<2x32xf32>
    %cst_45 = arith.constant 2.000000e+00 : f32
    %119 = vector.broadcast %cst_45 : f32 to vector<2x32xf32>
    %120 = arith.mulf %119, %118 : vector<2x32xf32>
    %cst_46 = arith.constant 1.000000e+00 : f32
    %121 = vector.broadcast %cst_46 : f32 to vector<2x32xf32>
    %122 = arith.subf %120, %121 : vector<2x32xf32>
    %123 = vector.extract_strided_slice %115 {offsets = [0, 96], sizes = [2, 32], strides = [1, 1]} : vector<2x128xf32> to vector<2x32xf32>
    %124 = arith.mulf %117, %105 : vector<2x32xf32>
    %125 = arith.mulf %116, %122 : vector<2x32xf32>
    %126 = arith.addf %124, %125 : vector<2x32xf32>
    %127 = math.tanh %126 : vector<2x32xf32>
    %128 = arith.mulf %123, %127 : vector<2x32xf32>
    %129 = arith.truncf %128 : vector<2x32xf32> to vector<2x32xbf16>
    %cst_47 = arith.constant dense<0.000000e+00> : vector<2x128xf32>
    %130 = tpu.matmul %129, %1, %cst_47 {dimension_numbers = #tpu.dot_dimension_numbers<[1], [0], [0], [1], [0, 0, 1, 1], [], []>} : vector<2x32xbf16>, vector<32x128xbf16>, vector<2x128xf32> -> vector<2x128xf32>
    %131 = arith.addf %27, %130 : vector<2x128xf32>
    %132 = arith.negf %131 : vector<2x128xf32>
    %133 = math.exp %132 : vector<2x128xf32>
    %cst_48 = arith.constant 1.000000e+00 : f32
    %134 = vector.broadcast %cst_48 : f32 to vector<2x128xf32>
    %135 = arith.addf %134, %133 : vector<2x128xf32>
    %136 = arith.divf %134, %135 : vector<2x128xf32>
    %137 = vector.extract_strided_slice %136 {offsets = [0, 0], sizes = [2, 32], strides = [1, 1]} : vector<2x128xf32> to vector<2x32xf32>
    %138 = vector.extract_strided_slice %136 {offsets = [0, 32], sizes = [2, 32], strides = [1, 1]} : vector<2x128xf32> to vector<2x32xf32>
    %139 = vector.extract_strided_slice %136 {offsets = [0, 64], sizes = [2, 32], strides = [1, 1]} : vector<2x128xf32> to vector<2x32xf32>
    %cst_49 = arith.constant 2.000000e+00 : f32
    %140 = vector.broadcast %cst_49 : f32 to vector<2x32xf32>
    %141 = arith.mulf %140, %139 : vector<2x32xf32>
    %cst_50 = arith.constant 1.000000e+00 : f32
    %142 = vector.broadcast %cst_50 : f32 to vector<2x32xf32>
    %143 = arith.subf %141, %142 : vector<2x32xf32>
    %144 = vector.extract_strided_slice %136 {offsets = [0, 96], sizes = [2, 32], strides = [1, 1]} : vector<2x128xf32> to vector<2x32xf32>
    %145 = arith.mulf %138, %126 : vector<2x32xf32>
    %146 = arith.mulf %137, %143 : vector<2x32xf32>
    %147 = arith.addf %145, %146 : vector<2x32xf32>
    %148 = math.tanh %147 : vector<2x32xf32>
    %149 = arith.mulf %144, %148 : vector<2x32xf32>
    %150 = arith.truncf %149 : vector<2x32xf32> to vector<2x32xbf16>
    %cst_51 = arith.constant dense<0.000000e+00> : vector<2x128xf32>
    %151 = tpu.matmul %150, %1, %cst_51 {dimension_numbers = #tpu.dot_dimension_numbers<[1], [0], [0], [1], [0, 0, 1, 1], [], []>} : vector<2x32xbf16>, vector<32x128xbf16>, vector<2x128xf32> -> vector<2x128xf32>
    %152 = arith.addf %32, %151 : vector<2x128xf32>
    %153 = arith.negf %152 : vector<2x128xf32>
    %154 = math.exp %153 : vector<2x128xf32>
    %cst_52 = arith.constant 1.000000e+00 : f32
    %155 = vector.broadcast %cst_52 : f32 to vector<2x128xf32>
    %156 = arith.addf %155, %154 : vector<2x128xf32>
    %157 = arith.divf %155, %156 : vector<2x128xf32>
    %158 = vector.extract_strided_slice %157 {offsets = [0, 0], sizes = [2, 32], strides = [1, 1]} : vector<2x128xf32> to vector<2x32xf32>
    %159 = vector.extract_strided_slice %157 {offsets = [0, 32], sizes = [2, 32], strides = [1, 1]} : vector<2x128xf32> to vector<2x32xf32>
    %160 = vector.extract_strided_slice %157 {offsets = [0, 64], sizes = [2, 32], strides = [1, 1]} : vector<2x128xf32> to vector<2x32xf32>
    %cst_53 = arith.constant 2.000000e+00 : f32
    %161 = vector.broadcast %cst_53 : f32 to vector<2x32xf32>
    %162 = arith.mulf %161, %160 : vector<2x32xf32>
    %cst_54 = arith.constant 1.000000e+00 : f32
    %163 = vector.broadcast %cst_54 : f32 to vector<2x32xf32>
    %164 = arith.subf %162, %163 : vector<2x32xf32>
    %165 = vector.extract_strided_slice %157 {offsets = [0, 96], sizes = [2, 32], strides = [1, 1]} : vector<2x128xf32> to vector<2x32xf32>
    %166 = arith.mulf %159, %147 : vector<2x32xf32>
    %167 = arith.mulf %158, %164 : vector<2x32xf32>
    %168 = arith.addf %166, %167 : vector<2x32xf32>
    %169 = math.tanh %168 : vector<2x32xf32>
    %170 = arith.mulf %165, %169 : vector<2x32xf32>
    %171 = arith.truncf %170 : vector<2x32xf32> to vector<2x32xbf16>
    %cst_55 = arith.constant dense<0.000000e+00> : vector<2x128xf32>
    %172 = tpu.matmul %171, %1, %cst_55 {dimension_numbers = #tpu.dot_dimension_numbers<[1], [0], [0], [1], [0, 0, 1, 1], [], []>} : vector<2x32xbf16>, vector<32x128xbf16>, vector<2x128xf32> -> vector<2x128xf32>
    %173 = arith.addf %37, %172 : vector<2x128xf32>
    %174 = arith.negf %173 : vector<2x128xf32>
    %175 = math.exp %174 : vector<2x128xf32>
    %cst_56 = arith.constant 1.000000e+00 : f32
    %176 = vector.broadcast %cst_56 : f32 to vector<2x128xf32>
    %177 = arith.addf %176, %175 : vector<2x128xf32>
    %178 = arith.divf %176, %177 : vector<2x128xf32>
    %179 = vector.extract_strided_slice %178 {offsets = [0, 0], sizes = [2, 32], strides = [1, 1]} : vector<2x128xf32> to vector<2x32xf32>
    %180 = vector.extract_strided_slice %178 {offsets = [0, 32], sizes = [2, 32], strides = [1, 1]} : vector<2x128xf32> to vector<2x32xf32>
    %181 = vector.extract_strided_slice %178 {offsets = [0, 64], sizes = [2, 32], strides = [1, 1]} : vector<2x128xf32> to vector<2x32xf32>
    %cst_57 = arith.constant 2.000000e+00 : f32
    %182 = vector.broadcast %cst_57 : f32 to vector<2x32xf32>
    %183 = arith.mulf %182, %181 : vector<2x32xf32>
    %cst_58 = arith.constant 1.000000e+00 : f32
    %184 = vector.broadcast %cst_58 : f32 to vector<2x32xf32>
    %185 = arith.subf %183, %184 : vector<2x32xf32>
    %186 = vector.extract_strided_slice %178 {offsets = [0, 96], sizes = [2, 32], strides = [1, 1]} : vector<2x128xf32> to vector<2x32xf32>
    %187 = arith.mulf %180, %168 : vector<2x32xf32>
    %188 = arith.mulf %179, %185 : vector<2x32xf32>
    %189 = arith.addf %187, %188 : vector<2x32xf32>
    %190 = math.tanh %189 : vector<2x32xf32>
    %191 = arith.mulf %186, %190 : vector<2x32xf32>
    %192 = arith.truncf %191 : vector<2x32xf32> to vector<2x32xbf16>
    %cst_59 = arith.constant dense<0.000000e+00> : vector<2x128xf32>
    %193 = tpu.matmul %192, %1, %cst_59 {dimension_numbers = #tpu.dot_dimension_numbers<[1], [0], [0], [1], [0, 0, 1, 1], [], []>} : vector<2x32xbf16>, vector<32x128xbf16>, vector<2x128xf32> -> vector<2x128xf32>
    %194 = arith.addf %42, %193 : vector<2x128xf32>
    %195 = arith.negf %194 : vector<2x128xf32>
    %196 = math.exp %195 : vector<2x128xf32>
    %cst_60 = arith.constant 1.000000e+00 : f32
    %197 = vector.broadcast %cst_60 : f32 to vector<2x128xf32>
    %198 = arith.addf %197, %196 : vector<2x128xf32>
    %199 = arith.divf %197, %198 : vector<2x128xf32>
    %200 = vector.extract_strided_slice %199 {offsets = [0, 0], sizes = [2, 32], strides = [1, 1]} : vector<2x128xf32> to vector<2x32xf32>
    %201 = vector.extract_strided_slice %199 {offsets = [0, 32], sizes = [2, 32], strides = [1, 1]} : vector<2x128xf32> to vector<2x32xf32>
    %202 = vector.extract_strided_slice %199 {offsets = [0, 64], sizes = [2, 32], strides = [1, 1]} : vector<2x128xf32> to vector<2x32xf32>
    %cst_61 = arith.constant 2.000000e+00 : f32
    %203 = vector.broadcast %cst_61 : f32 to vector<2x32xf32>
    %204 = arith.mulf %203, %202 : vector<2x32xf32>
    %cst_62 = arith.constant 1.000000e+00 : f32
    %205 = vector.broadcast %cst_62 : f32 to vector<2x32xf32>
    %206 = arith.subf %204, %205 : vector<2x32xf32>
    %207 = vector.extract_strided_slice %199 {offsets = [0, 96], sizes = [2, 32], strides = [1, 1]} : vector<2x128xf32> to vector<2x32xf32>
    %208 = arith.mulf %201, %189 : vector<2x32xf32>
    %209 = arith.mulf %200, %206 : vector<2x32xf32>
    %210 = arith.addf %208, %209 : vector<2x32xf32>
    %211 = math.tanh %210 : vector<2x32xf32>
    %212 = arith.mulf %207, %211 : vector<2x32xf32>
    %213 = tpu.concatenate %65, %86, %107, %128, %149, %170, %191, %212 in 1 : vector<2x32xf32>, vector<2x32xf32>, vector<2x32xf32>, vector<2x32xf32>, vector<2x32xf32>, vector<2x32xf32>, vector<2x32xf32>, vector<2x32xf32> -> vector<2x256xf32>
    %c0_63 = arith.constant 0 : index
    %c0_64 = arith.constant 0 : index
    %214 = vector.load %arg5[%c0_63, %c0_64] : memref<256x128xf32, #tpu.memory_space<vmem>>, vector<256x128xf32>
    %cst_65 = arith.constant dense<0.000000e+00> : vector<2x128xf32>
    %215 = tpu.matmul %213, %214, %cst_65 {dimension_numbers = #tpu.dot_dimension_numbers<[1], [0], [0], [1], [0, 0, 1, 1], [], []>} : vector<2x256xf32>, vector<256x128xf32>, vector<2x128xf32> -> vector<2x128xf32>
    %c0_66 = arith.constant 0 : index
    %c0_67 = arith.constant 0 : index
    %216 = vector.load %arg6[%c0_66, %c0_67] : memref<1x128xf32, #tpu.memory_space<vmem>>, vector<1x128xf32>
    %217 = vector.broadcast %216 : vector<1x128xf32> to vector<2x128xf32>
    %218 = arith.addf %215, %217 : vector<2x128xf32>
    %c0_68 = arith.constant 0 : index
    %c0_69 = arith.constant 0 : index
    %219 = vector.load %arg7[%c0_68, %c0_69] : memref<2x128xf32, #tpu.memory_space<vmem>>, vector<2x128xf32>
    tpu.vector_store %arg7[%c0_68, %c0_69], %218 {strides = array<i32>} : memref<2x128xf32, #tpu.memory_space<vmem>>, vector<2x128xf32>,
    return
  }
  func.func @transform_0(%arg0: i32) -> (i32, i32, i32) {
    %c0_i32 = arith.constant 0 : i32
    %c0_i32_0 = arith.constant 0 : i32
    %c0_i32_1 = arith.constant 0 : i32
    return %c0_i32, %arg0, %c0_i32_0 : i32, i32, i32
  }
  func.func @transform_1(%arg0: i32) -> (i32, i32) {
    %c0_i32 = arith.constant 0 : i32
    %c0_i32_0 = arith.constant 0 : i32
    %c0_i32_1 = arith.constant 0 : i32
    return %c0_i32, %c0_i32_0 : i32, i32
  }
  func.func @transform_2(%arg0: i32) -> (i32, i32) {
    %c0_i32 = arith.constant 0 : i32
    %c0_i32_0 = arith.constant 0 : i32
    %c0_i32_1 = arith.constant 0 : i32
    return %c0_i32, %c0_i32_0 : i32, i32
  }
  func.func @transform_3(%arg0: i32) -> (i32, i32) {
    %c0_i32 = arith.constant 0 : i32
    %c0_i32_0 = arith.constant 0 : i32
    %c0_i32_1 = arith.constant 0 : i32
    return %c0_i32, %c0_i32_0 : i32, i32
  }
  func.func @transform_4(%arg0: i32) -> (i32, i32) {
    %c0_i32 = arith.constant 0 : i32
    %c0_i32_0 = arith.constant 0 : i32
    %c0_i32_1 = arith.constant 0 : i32
    return %c0_i32, %c0_i32_0 : i32, i32
  }
  func.func @transform_5(%arg0: i32) -> (i32, i32) {
    %c0_i32 = arith.constant 0 : i32
    %c0_i32_0 = arith.constant 0 : i32
    %c0_i32_1 = arith.constant 0 : i32
    return %c0_i32, %c0_i32_0 : i32, i32
  }
  func.func @transform_6(%arg0: i32) -> (i32, i32) {
    %c0_i32 = arith.constant 0 : i32
    %c0_i32_0 = arith.constant 0 : i32
    return %arg0, %c0_i32 : i32, i32
  }
}

</mosaic_0001>

<llo_original>
// kernel: tpu_custom_call.1
$region0: #{tpu_custom_call.1}
  #allocation0 [shape = 'u32[]', space=smem, size = 0x4, offset = 0x4, fixed_abs, tag = 'smem constant byte address 0x4 - core index']
  #allocation1 [shape = 'u32[144,128]{1,0:T(1,128)}', space=vmem, size = 0x12000, scoped, tag = 'internal scratch']
  %s0 = inlined_call_operand.hbm [shape: f32[8,2,20], index: 0, kind: input, shape index: {}]
  %s1 = inlined_call_operand.hbm [shape: f32[20,128], index: 1, kind: input, shape index: {}]
  %s2 = inlined_call_operand.hbm [shape: bf16[32,128], index: 2, kind: input, shape index: {}]
  %s3 = inlined_call_operand.vmem [shape: f32[1,128], index: 3, kind: input, shape index: {}]
  %s4 = inlined_call_operand.hbm [shape: f32[256,128], index: 4, kind: input, shape index: {}]
  %s5 = inlined_call_operand.vmem [shape: f32[1,128], index: 5, kind: input, shape index: {}]
  %s6 = inlined_call_operand.hbm [shape: f32[2,128], index: 6, kind: output, shape index: {}]
  %s7 = sld [smem:[#allocation0]]
  $region50: #{tpu_custom_call.1} parent=0
    _
  %s9 = ssub.s32 1, %s7
  %s10 = scalar_select 0, %s9, %s7
  $region1: #{tpu_custom_call.1} parent=0
    #allocation2 [shape = 'u8[8192]{0}', space=vmem, size = 0x2000, scoped, tag = 'input window, operand 0, single buffered']
    #allocation3 [shape = 's32[1]{0}', space=sflag, size = 0x4, scoped, tag = 'scoped memory for tpu_custom_call.1']
    #allocation4 [shape = 's32[1]{0}', space=sflag, size = 0x4, scoped, tag = 'scoped memory for tpu_custom_call.1']
    #allocation5 [shape = 'u8[12288]{0}', space=vmem, size = 0x3000, scoped, tag = 'input window, operand 1, single buffered']
    #allocation6 [shape = 's32[1]{0}', space=sflag, size = 0x4, scoped, tag = 'scoped memory for tpu_custom_call.1']
    #allocation7 [shape = 'u8[8192]{0}', space=vmem, size = 0x2000, scoped, tag = 'input window, operand 2, single buffered']
    #allocation8 [shape = 'u8[131072]{0}', space=vmem, size = 0x20000, scoped, tag = 'input window, operand 4, single buffered']
    #allocation9 [shape = 's32[1]{0}', space=sflag, size = 0x4, scoped, tag = 'scoped memory for tpu_custom_call.1']
    #allocation10 [shape = 'u8[1024]{0}', space=vmem, size = 0x400, scoped, tag = 'output window, operand 0, single buffered']
    %11 = vsyncpa [#allocation3], 0
    %12 = vsyncpa [#allocation6], 0
    %13 = vsyncpa [#allocation9], 0
    %14 = vsyncpa [#allocation4], 0
    // Predicated region
    $region2: #{tpu_custom_call.1} parent=1 // pred_check
      _
    $region3: #{tpu_custom_call.1} parent=1 // pred_check_branch
      %16 = sbr.rel (0) target = $region5
    $region4: #{tpu_custom_call.1} parent=1 // pred_region
      %s18 = ssub.s32 256, 256
      %19 = vsyncadd [#allocation3], %s18
      %s20 = sshll.u32 [#allocation2], 4
      %s21 = int_to_ptr.vmem [resolvable:$true] %s20
      %26 = dma.hbm_to_vmem [thread:$0]  %s0, 256, %s21, [#allocation3], 32, 32, 2
    $region5: #{tpu_custom_call.1} parent=1 // pred_fallthru
      _
    // Predicated region
    $region6: #{tpu_custom_call.1} parent=1 // pred_check
      _
    $region7: #{tpu_custom_call.1} parent=1 // pred_check_branch
      %28 = sbr.rel (0) target = $region9
    $region8: #{tpu_custom_call.1} parent=1 // pred_region
      %s30 = ssub.s32 384, 384
      %31 = vsyncadd [#allocation6], %s30
      %s32 = sshll.u32 [#allocation5], 4
      %s33 = int_to_ptr.vmem [resolvable:$true] %s32
      %38 = dma.hbm_to_vmem [thread:$0]  %s1, 384, %s33, [#allocation6], 128, 128, 8
    $region9: #{tpu_custom_call.1} parent=1 // pred_fallthru
      _
    // Predicated region
    $region10: #{tpu_custom_call.1} parent=1 // pred_check
      _
    $region11: #{tpu_custom_call.1} parent=1 // pred_check_branch
      %40 = sbr.rel (0) target = $region13
    $region12: #{tpu_custom_call.1} parent=1 // pred_region
      %s42 = ssub.s32 256, 256
      %43 = vsyncadd [#allocation6], %s42
      %s44 = sshll.u32 [#allocation7], 4
      %s45 = int_to_ptr.vmem [resolvable:$true] %s44
      %50 = dma.hbm_to_vmem [thread:$0]  %s2, 256, %s45, [#allocation6], 64, 64, 4
    $region13: #{tpu_custom_call.1} parent=1 // pred_fallthru
      _
    // Predicated region
    $region14: #{tpu_custom_call.1} parent=1 // pred_check
      _
    $region15: #{tpu_custom_call.1} parent=1 // pred_check_branch
      %52 = sbr.rel (0) target = $region17
    $region16: #{tpu_custom_call.1} parent=1 // pred_region
      _
    $region17: #{tpu_custom_call.1} parent=1 // pred_fallthru
      _
    // Predicated region
    $region18: #{tpu_custom_call.1} parent=1 // pred_check
      _
    $region19: #{tpu_custom_call.1} parent=1 // pred_check_branch
      %54 = sbr.rel (0) target = $region21
    $region20: #{tpu_custom_call.1} parent=1 // pred_region
      %s56 = ssub.s32 4096, 4096
      %57 = vsyncadd [#allocation9], %s56
      %s58 = sshll.u32 [#allocation8], 4
      %s59 = int_to_ptr.vmem [resolvable:$true] %s58
      %64 = dma.hbm_to_vmem [thread:$0]  %s4, 4096, %s59, [#allocation9], 128, 128, 8
    $region21: #{tpu_custom_call.1} parent=1 // pred_fallthru
      _
    // Predicated region
    $region22: #{tpu_custom_call.1} parent=1 // pred_check
      _
    $region23: #{tpu_custom_call.1} parent=1 // pred_check_branch
      %66 = sbr.rel (0) target = $region25
    $region24: #{tpu_custom_call.1} parent=1 // pred_region
      _
    $region25: #{tpu_custom_call.1} parent=1 // pred_fallthru
      _
    // Predicated region
    $region26: #{tpu_custom_call.1} parent=1 // pred_check
      _
    $region27: #{tpu_custom_call.1} parent=1 // pred_check_branch
      %68 = sbr.rel (0) target = $region29
    $region28: #{tpu_custom_call.1} parent=1 // pred_region
      %69 = dma.done [#allocation3], 256
    $region29: #{tpu_custom_call.1} parent=1 // pred_fallthru
      _
    // Predicated region
    $region30: #{tpu_custom_call.1} parent=1 // pred_check
      _
    $region31: #{tpu_custom_call.1} parent=1 // pred_check_branch
      %71 = sbr.rel (0) target = $region33
    $region32: #{tpu_custom_call.1} parent=1 // pred_region
      %72 = dma.done [#allocation6], 384
    $region33: #{tpu_custom_call.1} parent=1 // pred_fallthru
      _
    // Predicated region
    $region34: #{tpu_custom_call.1} parent=1 // pred_check
      _
    $region35: #{tpu_custom_call.1} parent=1 // pred_check_branch
      %74 = sbr.rel (0) target = $region37
    $region36: #{tpu_custom_call.1} parent=1 // pred_region
      %75 = dma.done [#allocation6], 256
    $region37: #{tpu_custom_call.1} parent=1 // pred_fallthru
      _
    // Predicated region
    $region38: #{tpu_custom_call.1} parent=1 // pred_check
      _
    $region39: #{tpu_custom_call.1} parent=1 // pred_check_branch
      %77 = sbr.rel (0) target = $region41
    $region40: #{tpu_custom_call.1} parent=1 // pred_region
      %78 = dma.done [#allocation9], 4096
    $region41: #{tpu_custom_call.1} parent=1 // pred_fallthru
      _
    %v80 = vld [vmem:[#allocation5] sm:$0xff]
    %v81 = vld [vmem:[#allocation5 + $0x8] sm:$0xff]
    %v82 = vld [vmem:[#allocation5 + $0x10] sm:$0xf]
    %v83 = vld [vmem:[#allocation7] sm:$0xf]
    %v84 = vld [vmem:[#allocation7 + $0x4] sm:$0xf]
    %v85 = vld [vmem:[#allocation7 + $0x8] sm:$0xf]
    %v86 = vld [vmem:[#allocation7 + $0xc] sm:$0xf]
    %v87 = vld [vmem:[%s3] sm:$0x1]
    %v88 = vld [vmem:[#allocation2] sm:$0x3]
    %v90 = vlaneseq
    %v91 = vshrl.u32 %v90, 7
    %v92 = vsub.s32 0, %v91
    %v93 = vrot.slane %v87, %v92
    %vm95 = vcmask 162816
    %v97 = vsel %vm95, %v88, 0
    %vm99 = vcmask 1043456
    %v101 = vsel %vm99, %v82, 0
    %103 = vmatprep.subr.mxu0 0.0
    %104 = vmatpush1.msra.mxu0 0.0
    %105 = vmatprep.subr.mxu0 0.0
    %106 = vmatpush1.msra.mxu0 0.0
    %107 = vmatprep.subr.mxu0 0.0
    %108 = vmatpush1.msra.mxu0 0.0
    %109 = vmatprep.subr.mxu0 0.0
    %110 = vmatpush1.msra.mxu0 0.0
    %111 = vmatprep.subr.mxu0 0.0
    %112 = vmatpush1.msra.mxu0 0.0
    %113 = vmatprep.subr.mxu0 0.0
    %114 = vmatpush1.msra.mxu0 0.0
    %115 = vmatprep.subr.mxu0 0.0
    %116 = vmatpush1.msra.mxu0 0.0
    %117 = vmatprep.subr.mxu0 0.0
    %118 = vmatpush1.msra.mxu0 0.0
    %119 = vmatprep.subr.mxu0 0.0
    %120 = vmatpush1.msra.mxu0 0.0
    %121 = vmatprep.subr.mxu0 0.0
    %122 = vmatpush1.msra.mxu0 0.0
    %123 = vmatprep.subr.mxu0 0.0
    %124 = vmatpush1.msra.mxu0 0.0
    %125 = vmatprep.subr.mxu0 0.0
    %126 = vmatpush1.msra.mxu0 0.0
    %127 = vmatprep.subr.mxu0 0.0
    %128 = vmatpush1.msra.mxu0 0.0
    %129 = vmatprep.subr.mxu0 0.0
    %130 = vmatpush1.msra.mxu0 %v101
    %131 = vmatprep.subr.mxu0 0.0
    %132 = vmatpush1.msra.mxu0 %v81
    %133 = vmatprep.subr.mxu0 0.0
    %134 = vmatpush1.msra.mxu0 %v80
    %135 = vmatprep.subr.mxu0 0.0
    %136 = vmatpush2.msra.mxu0 0.0
    %137 = vmatprep.subr.mxu0 0.0
    %138 = vmatpush2.msra.mxu0 0.0
    %139 = vmatprep.subr.mxu0 0.0
    %140 = vmatpush2.msra.mxu0 0.0
    %141 = vmatprep.subr.mxu0 0.0
    %142 = vmatpush2.msra.mxu0 0.0
    %143 = vmatprep.subr.mxu0 0.0
    %144 = vmatpush2.msra.mxu0 0.0
    %145 = vmatprep.subr.mxu0 0.0
    %146 = vmatpush2.msra.mxu0 0.0
    %147 = vmatprep.subr.mxu0 0.0
    %148 = vmatpush2.msra.mxu0 0.0
    %149 = vmatprep.subr.mxu0 0.0
    %150 = vmatpush2.msra.mxu0 0.0
    %151 = vmatprep.subr.mxu0 0.0
    %152 = vmatpush2.msra.mxu0 0.0
    %153 = vmatprep.subr.mxu0 0.0
    %154 = vmatpush2.msra.mxu0 0.0
    %155 = vmatprep.subr.mxu0 0.0
    %156 = vmatpush2.msra.mxu0 0.0
    %157 = vmatprep.subr.mxu0 0.0
    %158 = vmatpush2.msra.mxu0 0.0
    %159 = vmatprep.subr.mxu0 0.0
    %160 = vmatpush2.msra.mxu0 0.0
    %161 = vmatprep.subr.mxu0 0.0
    %162 = vmatpush2.msra.mxu0 0.0
    %163 = vmatprep.subr.mxu0 0.0
    %164 = vmatpush2.msra.mxu0 0.0
    %165 = vmatprep.subr.mxu0 0.0
    %166 = vmatpush2.msra.mxu0 0.0
    %167 = vmatprep.mubr.f32.mxu0 0.0
    %168 = vmatmul.mubr.f32.gmra.mxu0 %v97
    %v169 = vpop.f32.mrf.mxu0
    %v170 = vadd.f32 %v93, %v169
    %v171 = vpop.f32.mrf.mxu0
    %172 = vdwg.mxu0
    %s173 = scalar_lea.vmem [#allocation2], 2
    %v174 = vld [vmem:[%s173] sm:$0x3]
    %v176 = vsel %vm95, %v174, 0
    %178 = vmatprep.subr.mxu0 0.0
    %179 = vmatpush1.msra.mxu0 0.0
    %180 = vmatprep.subr.mxu0 0.0
    %181 = vmatpush1.msra.mxu0 0.0
    %182 = vmatprep.subr.mxu0 0.0
    %183 = vmatpush1.msra.mxu0 0.0
    %184 = vmatprep.subr.mxu0 0.0
    %185 = vmatpush1.msra.mxu0 0.0
    %186 = vmatprep.subr.mxu0 0.0
    %187 = vmatpush1.msra.mxu0 0.0
    %188 = vmatprep.subr.mxu0 0.0
    %189 = vmatpush1.msra.mxu0 0.0
    %190 = vmatprep.subr.mxu0 0.0
    %191 = vmatpush1.msra.mxu0 0.0
    %192 = vmatprep.subr.mxu0 0.0
    %193 = vmatpush1.msra.mxu0 0.0
    %194 = vmatprep.subr.mxu0 0.0
    %195 = vmatpush1.msra.mxu0 0.0
    %196 = vmatprep.subr.mxu0 0.0
    %197 = vmatpush1.msra.mxu0 0.0
    %198 = vmatprep.subr.mxu0 0.0
    %199 = vmatpush1.msra.mxu0 0.0
    %200 = vmatprep.subr.mxu0 0.0
    %201 = vmatpush1.msra.mxu0 0.0
    %202 = vmatprep.subr.mxu0 0.0
    %203 = vmatpush1.msra.mxu0 0.0
    %204 = vmatprep.subr.mxu0 0.0
    %205 = vmatpush1.msra.mxu0 %v101
    %206 = vmatprep.subr.mxu0 0.0
    %207 = vmatpush1.msra.mxu0 %v81
    %208 = vmatprep.subr.mxu0 0.0
    %209 = vmatpush1.msra.mxu0 %v80
    %210 = vmatprep.subr.mxu0 0.0
    %211 = vmatpush2.msra.mxu0 0.0
    %212 = vmatprep.subr.mxu0 0.0
    %213 = vmatpush2.msra.mxu0 0.0
    %214 = vmatprep.subr.mxu0 0.0
    %215 = vmatpush2.msra.mxu0 0.0
    %216 = vmatprep.subr.mxu0 0.0
    %217 = vmatpush2.msra.mxu0 0.0
    %218 = vmatprep.subr.mxu0 0.0
    %219 = vmatpush2.msra.mxu0 0.0
    %220 = vmatprep.subr.mxu0 0.0
    %221 = vmatpush2.msra.mxu0 0.0
    %222 = vmatprep.subr.mxu0 0.0
    %223 = vmatpush2.msra.mxu0 0.0
    %224 = vmatprep.subr.mxu0 0.0
    %225 = vmatpush2.msra.mxu0 0.0
    %226 = vmatprep.subr.mxu0 0.0
    %227 = vmatpush2.msra.mxu0 0.0
    %228 = vmatprep.subr.mxu0 0.0
    %229 = vmatpush2.msra.mxu0 0.0
    %230 = vmatprep.subr.mxu0 0.0
    %231 = vmatpush2.msra.mxu0 0.0
    %232 = vmatprep.subr.mxu0 0.0
    %233 = vmatpush2.msra.mxu0 0.0
    %234 = vmatprep.subr.mxu0 0.0
    %235 = vmatpush2.msra.mxu0 0.0
    %236 = vmatprep.subr.mxu0 0.0
    %237 = vmatpush2.msra.mxu0 0.0
    %238 = vmatprep.subr.mxu0 0.0
    %239 = vmatpush2.msra.mxu0 0.0
    %240 = vmatprep.subr.mxu0 0.0
    %241 = vmatpush2.msra.mxu0 0.0
    %242 = vmatprep.mubr.f32.mxu0 0.0
    %243 = vmatmul.mubr.f32.gmra.mxu0 %v176
    %v244 = vpop.f32.mrf.mxu0
    %v245 = vadd.f32 %v93, %v244
    %v246 = vpop.f32.mrf.mxu0
    %247 = vdwg.mxu0
    %s248 = scalar_lea.vmem [#allocation2], 4
    %v249 = vld [vmem:[%s248] sm:$0x3]
    %v251 = vsel %vm95, %v249, 0
    %253 = vmatprep.subr.mxu0 0.0
    %254 = vmatpush1.msra.mxu0 0.0
    %255 = vmatprep.subr.mxu0 0.0
    %256 = vmatpush1.msra.mxu0 0.0
    %257 = vmatprep.subr.mxu0 0.0
    %258 = vmatpush1.msra.mxu0 0.0
    %259 = vmatprep.subr.mxu0 0.0
    %260 = vmatpush1.msra.mxu0 0.0
    %261 = vmatprep.subr.mxu0 0.0
    %262 = vmatpush1.msra.mxu0 0.0
    %263 = vmatprep.subr.mxu0 0.0
    %264 = vmatpush1.msra.mxu0 0.0
    %265 = vmatprep.subr.mxu0 0.0
    %266 = vmatpush1.msra.mxu0 0.0
    %267 = vmatprep.subr.mxu0 0.0
    %268 = vmatpush1.msra.mxu0 0.0
    %269 = vmatprep.subr.mxu0 0.0
    %270 = vmatpush1.msra.mxu0 0.0
    %271 = vmatprep.subr.mxu0 0.0
    %272 = vmatpush1.msra.mxu0 0.0
    %273 = vmatprep.subr.mxu0 0.0
    %274 = vmatpush1.msra.mxu0 0.0
    %275 = vmatprep.subr.mxu0 0.0
    %276 = vmatpush1.msra.mxu0 0.0
    %277 = vmatprep.subr.mxu0 0.0
    %278 = vmatpush1.msra.mxu0 0.0
    %279 = vmatprep.subr.mxu0 0.0
    %280 = vmatpush1.msra.mxu0 %v101
    %281 = vmatprep.subr.mxu0 0.0
    %282 = vmatpush1.msra.mxu0 %v81
    %283 = vmatprep.subr.mxu0 0.0
    %284 = vmatpush1.msra.mxu0 %v80
    %285 = vmatprep.subr.mxu0 0.0
    %286 = vmatpush2.msra.mxu0 0.0
    %287 = vmatprep.subr.mxu0 0.0
    %288 = vmatpush2.msra.mxu0 0.0
    %289 = vmatprep.subr.mxu0 0.0
    %290 = vmatpush2.msra.mxu0 0.0
    %291 = vmatprep.subr.mxu0 0.0
    %292 = vmatpush2.msra.mxu0 0.0
    %293 = vmatprep.subr.mxu0 0.0
    %294 = vmatpush2.msra.mxu0 0.0
    %295 = vmatprep.subr.mxu0 0.0
    %296 = vmatpush2.msra.mxu0 0.0
    %297 = vmatprep.subr.mxu0 0.0
    %298 = vmatpush2.msra.mxu0 0.0
    %299 = vmatprep.subr.mxu0 0.0
    %300 = vmatpush2.msra.mxu0 0.0
    %301 = vmatprep.subr.mxu0 0.0
    %302 = vmatpush2.msra.mxu0 0.0
    %303 = vmatprep.subr.mxu0 0.0
    %304 = vmatpush2.msra.mxu0 0.0
    %305 = vmatprep.subr.mxu0 0.0
    %306 = vmatpush2.msra.mxu0 0.0
    %307 = vmatprep.subr.mxu0 0.0
    %308 = vmatpush2.msra.mxu0 0.0
    %309 = vmatprep.subr.mxu0 0.0
    %310 = vmatpush2.msra.mxu0 0.0
    %311 = vmatprep.subr.mxu0 0.0
    %312 = vmatpush2.msra.mxu0 0.0
    %313 = vmatprep.subr.mxu0 0.0
    %314 = vmatpush2.msra.mxu0 0.0
    %315 = vmatprep.subr.mxu0 0.0
    %316 = vmatpush2.msra.mxu0 0.0
    %317 = vmatprep.mubr.f32.mxu0 0.0
    %318 = vmatmul.mubr.f32.gmra.mxu0 %v251
    %v319 = vpop.f32.mrf.mxu0
    %v320 = vadd.f32 %v93, %v319
    %v321 = vpop.f32.mrf.mxu0
    %322 = vdwg.mxu0
    %s323 = scalar_lea.vmem [#allocation2], 6
    %v324 = vld [vmem:[%s323] sm:$0x3]
    %v326 = vsel %vm95, %v324, 0
    %328 = vmatprep.subr.mxu0 0.0
    %329 = vmatpush1.msra.mxu0 0.0
    %330 = vmatprep.subr.mxu0 0.0
    %331 = vmatpush1.msra.mxu0 0.0
    %332 = vmatprep.subr.mxu0 0.0
    %333 = vmatpush1.msra.mxu0 0.0
    %334 = vmatprep.subr.mxu0 0.0
    %335 = vmatpush1.msra.mxu0 0.0
    %336 = vmatprep.subr.mxu0 0.0
    %337 = vmatpush1.msra.mxu0 0.0
    %338 = vmatprep.subr.mxu0 0.0
    %339 = vmatpush1.msra.mxu0 0.0
    %340 = vmatprep.subr.mxu0 0.0
    %341 = vmatpush1.msra.mxu0 0.0
    %342 = vmatprep.subr.mxu0 0.0
    %343 = vmatpush1.msra.mxu0 0.0
    %344 = vmatprep.subr.mxu0 0.0
    %345 = vmatpush1.msra.mxu0 0.0
    %346 = vmatprep.subr.mxu0 0.0
    %347 = vmatpush1.msra.mxu0 0.0
    %348 = vmatprep.subr.mxu0 0.0
    %349 = vmatpush1.msra.mxu0 0.0
    %350 = vmatprep.subr.mxu0 0.0
    %351 = vmatpush1.msra.mxu0 0.0
    %352 = vmatprep.subr.mxu0 0.0
    %353 = vmatpush1.msra.mxu0 0.0
    %354 = vmatprep.subr.mxu0 0.0
    %355 = vmatpush1.msra.mxu0 %v101
    %356 = vmatprep.subr.mxu0 0.0
    %357 = vmatpush1.msra.mxu0 %v81
    %358 = vmatprep.subr.mxu0 0.0
    %359 = vmatpush1.msra.mxu0 %v80
    %360 = vmatprep.subr.mxu0 0.0
    %361 = vmatpush2.msra.mxu0 0.0
    %362 = vmatprep.subr.mxu0 0.0
    %363 = vmatpush2.msra.mxu0 0.0
    %364 = vmatprep.subr.mxu0 0.0
    %365 = vmatpush2.msra.mxu0 0.0
    %366 = vmatprep.subr.mxu0 0.0
    %367 = vmatpush2.msra.mxu0 0.0
    %368 = vmatprep.subr.mxu0 0.0
    %369 = vmatpush2.msra.mxu0 0.0
    %370 = vmatprep.subr.mxu0 0.0
    %371 = vmatpush2.msra.mxu0 0.0
    %372 = vmatprep.subr.mxu0 0.0
    %373 = vmatpush2.msra.mxu0 0.0
    %374 = vmatprep.subr.mxu0 0.0
    %375 = vmatpush2.msra.mxu0 0.0
    %376 = vmatprep.subr.mxu0 0.0
    %377 = vmatpush2.msra.mxu0 0.0
    %378 = vmatprep.subr.mxu0 0.0
    %379 = vmatpush2.msra.mxu0 0.0
    %380 = vmatprep.subr.mxu0 0.0
    %381 = vmatpush2.msra.mxu0 0.0
    %382 = vmatprep.subr.mxu0 0.0
    %383 = vmatpush2.msra.mxu0 0.0
    %384 = vmatprep.subr.mxu0 0.0
    %385 = vmatpush2.msra.mxu0 0.0
    %386 = vmatprep.subr.mxu0 0.0
    %387 = vmatpush2.msra.mxu0 0.0
    %388 = vmatprep.subr.mxu0 0.0
    %389 = vmatpush2.msra.mxu0 0.0
    %390 = vmatprep.subr.mxu0 0.0
    %391 = vmatpush2.msra.mxu0 0.0
    %392 = vmatprep.mubr.f32.mxu0 0.0
    %393 = vmatmul.mubr.f32.gmra.mxu0 %v326
    %v394 = vpop.f32.mrf.mxu0
    %v395 = vadd.f32 %v93, %v394
    %v396 = vpop.f32.mrf.mxu0
    %397 = vdwg.mxu0
    %s398 = scalar_lea.vmem [#allocation2], 8
    %v399 = vld [vmem:[%s398] sm:$0x3]
    %v401 = vsel %vm95, %v399, 0
    %403 = vmatprep.subr.mxu0 0.0
    %404 = vmatpush1.msra.mxu0 0.0
    %405 = vmatprep.subr.mxu0 0.0
    %406 = vmatpush1.msra.mxu0 0.0
    %407 = vmatprep.subr.mxu0 0.0
    %408 = vmatpush1.msra.mxu0 0.0
    %409 = vmatprep.subr.mxu0 0.0
    %410 = vmatpush1.msra.mxu0 0.0
    %411 = vmatprep.subr.mxu0 0.0
    %412 = vmatpush1.msra.mxu0 0.0
    %413 = vmatprep.subr.mxu0 0.0
    %414 = vmatpush1.msra.mxu0 0.0
    %415 = vmatprep.subr.mxu0 0.0
    %416 = vmatpush1.msra.mxu0 0.0
    %417 = vmatprep.subr.mxu0 0.0
    %418 = vmatpush1.msra.mxu0 0.0
    %419 = vmatprep.subr.mxu0 0.0
    %420 = vmatpush1.msra.mxu0 0.0
    %421 = vmatprep.subr.mxu0 0.0
    %422 = vmatpush1.msra.mxu0 0.0
    %423 = vmatprep.subr.mxu0 0.0
    %424 = vmatpush1.msra.mxu0 0.0
    %425 = vmatprep.subr.mxu0 0.0
    %426 = vmatpush1.msra.mxu0 0.0
    %427 = vmatprep.subr.mxu0 0.0
    %428 = vmatpush1.msra.mxu0 0.0
    %429 = vmatprep.subr.mxu0 0.0
    %430 = vmatpush1.msra.mxu0 %v101
    %431 = vmatprep.subr.mxu0 0.0
    %432 = vmatpush1.msra.mxu0 %v81
    %433 = vmatprep.subr.mxu0 0.0
    %434 = vmatpush1.msra.mxu0 %v80
    %435 = vmatprep.subr.mxu0 0.0
    %436 = vmatpush2.msra.mxu0 0.0
    %437 = vmatprep.subr.mxu0 0.0
    %438 = vmatpush2.msra.mxu0 0.0
    %439 = vmatprep.subr.mxu0 0.0
    %440 = vmatpush2.msra.mxu0 0.0
    %441 = vmatprep.subr.mxu0 0.0
    %442 = vmatpush2.msra.mxu0 0.0
    %443 = vmatprep.subr.mxu0 0.0
    %444 = vmatpush2.msra.mxu0 0.0
    %445 = vmatprep.subr.mxu0 0.0
    %446 = vmatpush2.msra.mxu0 0.0
    %447 = vmatprep.subr.mxu0 0.0
    %448 = vmatpush2.msra.mxu0 0.0
    %449 = vmatprep.subr.mxu0 0.0
    %450 = vmatpush2.msra.mxu0 0.0
    %451 = vmatprep.subr.mxu0 0.0
    %452 = vmatpush2.msra.mxu0 0.0
    %453 = vmatprep.subr.mxu0 0.0
    %454 = vmatpush2.msra.mxu0 0.0
    %455 = vmatprep.subr.mxu0 0.0
    %456 = vmatpush2.msra.mxu0 0.0
    %457 = vmatprep.subr.mxu0 0.0
    %458 = vmatpush2.msra.mxu0 0.0
    %459 = vmatprep.subr.mxu0 0.0
    %460 = vmatpush2.msra.mxu0 0.0
    %461 = vmatprep.subr.mxu0 0.0
    %462 = vmatpush2.msra.mxu0 0.0
    %463 = vmatprep.subr.mxu0 0.0
    %464 = vmatpush2.msra.mxu0 0.0
    %465 = vmatprep.subr.mxu0 0.0
    %466 = vmatpush2.msra.mxu0 0.0
    %467 = vmatprep.mubr.f32.mxu0 0.0
    %468 = vmatmul.mubr.f32.gmra.mxu0 %v401
    %v469 = vpop.f32.mrf.mxu0
    %v470 = vadd.f32 %v93, %v469
    %v471 = vpop.f32.mrf.mxu0
    %472 = vdwg.mxu0
    %s473 = scalar_lea.vmem [#allocation2], 10
    %v474 = vld [vmem:[%s473] sm:$0x3]
    %v476 = vsel %vm95, %v474, 0
    %478 = vmatprep.subr.mxu0 0.0
    %479 = vmatpush1.msra.mxu0 0.0
    %480 = vmatprep.subr.mxu0 0.0
    %481 = vmatpush1.msra.mxu0 0.0
    %482 = vmatprep.subr.mxu0 0.0
    %483 = vmatpush1.msra.mxu0 0.0
    %484 = vmatprep.subr.mxu0 0.0
    %485 = vmatpush1.msra.mxu0 0.0
    %486 = vmatprep.subr.mxu0 0.0
    %487 = vmatpush1.msra.mxu0 0.0
    %488 = vmatprep.subr.mxu0 0.0
    %489 = vmatpush1.msra.mxu0 0.0
    %490 = vmatprep.subr.mxu0 0.0
    %491 = vmatpush1.msra.mxu0 0.0
    %492 = vmatprep.subr.mxu0 0.0
    %493 = vmatpush1.msra.mxu0 0.0
    %494 = vmatprep.subr.mxu0 0.0
    %495 = vmatpush1.msra.mxu0 0.0
    %496 = vmatprep.subr.mxu0 0.0
    %497 = vmatpush1.msra.mxu0 0.0
    %498 = vmatprep.subr.mxu0 0.0
    %499 = vmatpush1.msra.mxu0 0.0
    %500 = vmatprep.subr.mxu0 0.0
    %501 = vmatpush1.msra.mxu0 0.0
    %502 = vmatprep.subr.mxu0 0.0
    %503 = vmatpush1.msra.mxu0 0.0
    %504 = vmatprep.subr.mxu0 0.0
    %505 = vmatpush1.msra.mxu0 %v101
    %506 = vmatprep.subr.mxu0 0.0
    %507 = vmatpush1.msra.mxu0 %v81
    %508 = vmatprep.subr.mxu0 0.0
    %509 = vmatpush1.msra.mxu0 %v80
    %510 = vmatprep.subr.mxu0 0.0
    %511 = vmatpush2.msra.mxu0 0.0
    %512 = vmatprep.subr.mxu0 0.0
    %513 = vmatpush2.msra.mxu0 0.0
    %514 = vmatprep.subr.mxu0 0.0
    %515 = vmatpush2.msra.mxu0 0.0
    %516 = vmatprep.subr.mxu0 0.0
    %517 = vmatpush2.msra.mxu0 0.0
    %518 = vmatprep.subr.mxu0 0.0
    %519 = vmatpush2.msra.mxu0 0.0
    %520 = vmatprep.subr.mxu0 0.0
    %521 = vmatpush2.msra.mxu0 0.0
    %522 = vmatprep.subr.mxu0 0.0
    %523 = vmatpush2.msra.mxu0 0.0
    %524 = vmatprep.subr.mxu0 0.0
    %525 = vmatpush2.msra.mxu0 0.0
    %526 = vmatprep.subr.mxu0 0.0
    %527 = vmatpush2.msra.mxu0 0.0
    %528 = vmatprep.subr.mxu0 0.0
    %529 = vmatpush2.msra.mxu0 0.0
    %530 = vmatprep.subr.mxu0 0.0
    %531 = vmatpush2.msra.mxu0 0.0
    %532 = vmatprep.subr.mxu0 0.0
    %533 = vmatpush2.msra.mxu0 0.0
    %534 = vmatprep.subr.mxu0 0.0
    %535 = vmatpush2.msra.mxu0 0.0
    %536 = vmatprep.subr.mxu0 0.0
    %537 = vmatpush2.msra.mxu0 0.0
    %538 = vmatprep.subr.mxu0 0.0
    %539 = vmatpush2.msra.mxu0 0.0
    %540 = vmatprep.subr.mxu0 0.0
    %541 = vmatpush2.msra.mxu0 0.0
    %542 = vmatprep.mubr.f32.mxu0 0.0
    %543 = vmatmul.mubr.f32.gmra.mxu0 %v476
    %v544 = vpop.f32.mrf.mxu0
    %v545 = vadd.f32 %v93, %v544
    %v546 = vpop.f32.mrf.mxu0
    %547 = vdwg.mxu0
    %s548 = scalar_lea.vmem [#allocation2], 12
    %v549 = vld [vmem:[%s548] sm:$0x3]
    %v551 = vsel %vm95, %v549, 0
    %553 = vmatprep.subr.mxu0 0.0
    %554 = vmatpush1.msra.mxu0 0.0
    %555 = vmatprep.subr.mxu0 0.0
    %556 = vmatpush1.msra.mxu0 0.0
    %557 = vmatprep.subr.mxu0 0.0
    %558 = vmatpush1.msra.mxu0 0.0
    %559 = vmatprep.subr.mxu0 0.0
    %560 = vmatpush1.msra.mxu0 0.0
    %561 = vmatprep.subr.mxu0 0.0
    %562 = vmatpush1.msra.mxu0 0.0
    %563 = vmatprep.subr.mxu0 0.0
    %564 = vmatpush1.msra.mxu0 0.0
    %565 = vmatprep.subr.mxu0 0.0
    %566 = vmatpush1.msra.mxu0 0.0
    %567 = vmatprep.subr.mxu0 0.0
    %568 = vmatpush1.msra.mxu0 0.0
    %569 = vmatprep.subr.mxu0 0.0
    %570 = vmatpush1.msra.mxu0 0.0
    %571 = vmatprep.subr.mxu0 0.0
    %572 = vmatpush1.msra.mxu0 0.0
    %573 = vmatprep.subr.mxu0 0.0
    %574 = vmatpush1.msra.mxu0 0.0
    %575 = vmatprep.subr.mxu0 0.0
    %576 = vmatpush1.msra.mxu0 0.0
    %577 = vmatprep.subr.mxu0 0.0
    %578 = vmatpush1.msra.mxu0 0.0
    %579 = vmatprep.subr.mxu0 0.0
    %580 = vmatpush1.msra.mxu0 %v101
    %581 = vmatprep.subr.mxu0 0.0
    %582 = vmatpush1.msra.mxu0 %v81
    %583 = vmatprep.subr.mxu0 0.0
    %584 = vmatpush1.msra.mxu0 %v80
    %585 = vmatprep.subr.mxu0 0.0
    %586 = vmatpush2.msra.mxu0 0.0
    %587 = vmatprep.subr.mxu0 0.0
    %588 = vmatpush2.msra.mxu0 0.0
    %589 = vmatprep.subr.mxu0 0.0
    %590 = vmatpush2.msra.mxu0 0.0
    %591 = vmatprep.subr.mxu0 0.0
    %592 = vmatpush2.msra.mxu0 0.0
    %593 = vmatprep.subr.mxu0 0.0
    %594 = vmatpush2.msra.mxu0 0.0
    %595 = vmatprep.subr.mxu0 0.0
    %596 = vmatpush2.msra.mxu0 0.0
    %597 = vmatprep.subr.mxu0 0.0
    %598 = vmatpush2.msra.mxu0 0.0
    %599 = vmatprep.subr.mxu0 0.0
    %600 = vmatpush2.msra.mxu0 0.0
    %601 = vmatprep.subr.mxu0 0.0
    %602 = vmatpush2.msra.mxu0 0.0
    %603 = vmatprep.subr.mxu0 0.0
    %604 = vmatpush2.msra.mxu0 0.0
    %605 = vmatprep.subr.mxu0 0.0
    %606 = vmatpush2.msra.mxu0 0.0
    %607 = vmatprep.subr.mxu0 0.0
    %608 = vmatpush2.msra.mxu0 0.0
    %609 = vmatprep.subr.mxu0 0.0
    %610 = vmatpush2.msra.mxu0 0.0
    %611 = vmatprep.subr.mxu0 0.0
    %612 = vmatpush2.msra.mxu0 0.0
    %613 = vmatprep.subr.mxu0 0.0
    %614 = vmatpush2.msra.mxu0 0.0
    %615 = vmatprep.subr.mxu0 0.0
    %616 = vmatpush2.msra.mxu0 0.0
    %617 = vmatprep.mubr.f32.mxu0 0.0
    %618 = vmatmul.mubr.f32.gmra.mxu0 %v551
    %v619 = vpop.f32.mrf.mxu0
    %v620 = vadd.f32 %v93, %v619
    %v621 = vpop.f32.mrf.mxu0
    %622 = vdwg.mxu0
    %s623 = scalar_lea.vmem [#allocation2], 14
    %v624 = vld [vmem:[%s623] sm:$0x3]
    %v626 = vsel %vm95, %v624, 0
    %628 = vmatprep.subr.mxu0 0.0
    %629 = vmatpush1.msra.mxu0 0.0
    %630 = vmatprep.subr.mxu0 0.0
    %631 = vmatpush1.msra.mxu0 0.0
    %632 = vmatprep.subr.mxu0 0.0
    %633 = vmatpush1.msra.mxu0 0.0
    %634 = vmatprep.subr.mxu0 0.0
    %635 = vmatpush1.msra.mxu0 0.0
    %636 = vmatprep.subr.mxu0 0.0
    %637 = vmatpush1.msra.mxu0 0.0
    %638 = vmatprep.subr.mxu0 0.0
    %639 = vmatpush1.msra.mxu0 0.0
    %640 = vmatprep.subr.mxu0 0.0
    %641 = vmatpush1.msra.mxu0 0.0
    %642 = vmatprep.subr.mxu0 0.0
    %643 = vmatpush1.msra.mxu0 0.0
    %644 = vmatprep.subr.mxu0 0.0
    %645 = vmatpush1.msra.mxu0 0.0
    %646 = vmatprep.subr.mxu0 0.0
    %647 = vmatpush1.msra.mxu0 0.0
    %648 = vmatprep.subr.mxu0 0.0
    %649 = vmatpush1.msra.mxu0 0.0
    %650 = vmatprep.subr.mxu0 0.0
    %651 = vmatpush1.msra.mxu0 0.0
    %652 = vmatprep.subr.mxu0 0.0
    %653 = vmatpush1.msra.mxu0 0.0
    %654 = vmatprep.subr.mxu0 0.0
    %655 = vmatpush1.msra.mxu0 %v101
    %656 = vmatprep.subr.mxu0 0.0
    %657 = vmatpush1.msra.mxu0 %v81
    %658 = vmatprep.subr.mxu0 0.0
    %659 = vmatpush1.msra.mxu0 %v80
    %660 = vmatprep.subr.mxu0 0.0
    %661 = vmatpush2.msra.mxu0 0.0
    %662 = vmatprep.subr.mxu0 0.0
    %663 = vmatpush2.msra.mxu0 0.0
    %664 = vmatprep.subr.mxu0 0.0
    %665 = vmatpush2.msra.mxu0 0.0
    %666 = vmatprep.subr.mxu0 0.0
    %667 = vmatpush2.msra.mxu0 0.0
    %668 = vmatprep.subr.mxu0 0.0
    %669 = vmatpush2.msra.mxu0 0.0
    %670 = vmatprep.subr.mxu0 0.0
    %671 = vmatpush2.msra.mxu0 0.0
    %672 = vmatprep.subr.mxu0 0.0
    %673 = vmatpush2.msra.mxu0 0.0
    %674 = vmatprep.subr.mxu0 0.0
    %675 = vmatpush2.msra.mxu0 0.0
    %676 = vmatprep.subr.mxu0 0.0
    %677 = vmatpush2.msra.mxu0 0.0
    %678 = vmatprep.subr.mxu0 0.0
    %679 = vmatpush2.msra.mxu0 0.0
    %680 = vmatprep.subr.mxu0 0.0
    %681 = vmatpush2.msra.mxu0 0.0
    %682 = vmatprep.subr.mxu0 0.0
    %683 = vmatpush2.msra.mxu0 0.0
    %684 = vmatprep.subr.mxu0 0.0
    %685 = vmatpush2.msra.mxu0 0.0
    %686 = vmatprep.subr.mxu0 0.0
    %687 = vmatpush2.msra.mxu0 0.0
    %688 = vmatprep.subr.mxu0 0.0
    %689 = vmatpush2.msra.mxu0 0.0
    %690 = vmatprep.subr.mxu0 0.0
    %691 = vmatpush2.msra.mxu0 0.0
    %692 = vmatprep.mubr.f32.mxu0 0.0
    %693 = vmatmul.mubr.f32.gmra.mxu0 %v626
    %v694 = vpop.f32.mrf.mxu0
    %v695 = vadd.f32 %v93, %v694
    %v696 = vpop.f32.mrf.mxu0
    %697 = vdwg.mxu0
    %v702 = vunpack.c.l.b16 %v83
    %v703 = vunpack.c.l.b16 %v84
    %v704 = vunpack.c.l.b16 %v85
    %v705 = vunpack.c.l.b16 %v86
    %v706 = vpack.c.b16 %v703, %v702
    %v707 = vpack.c.b16 %v705, %v704
    %vm710 = vcmask 261120
    %v712 = vsel %vm710, 0, 0
    %714 = vmatprep.subr.bf16.mxu0 0
    %715 = vmatpush1.bf16.msra.mxu0 0
    %716 = vmatprep.subr.bf16.mxu0 0
    %717 = vmatpush1.bf16.msra.mxu0 0
    %718 = vmatprep.subr.bf16.mxu0 0
    %719 = vmatpush1.bf16.msra.mxu0 0
    %720 = vmatprep.subr.bf16.mxu0 0
    %721 = vmatpush1.bf16.msra.mxu0 0
    %722 = vmatprep.subr.bf16.mxu0 0
    %723 = vmatpush1.bf16.msra.mxu0 0
    %724 = vmatprep.subr.bf16.mxu0 0
    %725 = vmatpush1.bf16.msra.mxu0 0
    %726 = vmatprep.subr.bf16.mxu0 0
    %727 = vmatpush1.bf16.msra.mxu0 %v707
    %728 = vmatprep.subr.bf16.mxu0 0
    %729 = vmatpush1.bf16.msra.mxu0 %v706
    %730 = vmatprep.subr.bf16.mxu0 0
    %731 = vmatpush2.bf16.msra.mxu0 0
    %732 = vmatprep.subr.bf16.mxu0 0
    %733 = vmatpush2.bf16.msra.mxu0 0
    %734 = vmatprep.subr.bf16.mxu0 0
    %735 = vmatpush2.bf16.msra.mxu0 0
    %736 = vmatprep.subr.bf16.mxu0 0
    %737 = vmatpush2.bf16.msra.mxu0 0
    %738 = vmatprep.subr.bf16.mxu0 0
    %739 = vmatpush2.bf16.msra.mxu0 0
    %740 = vmatprep.subr.bf16.mxu0 0
    %741 = vmatpush2.bf16.msra.mxu0 0
    %742 = vmatprep.subr.bf16.mxu0 0
    %743 = vmatpush2.bf16.msra.mxu0 0
    %744 = vmatprep.subr.bf16.mxu0 0
    %745 = vmatpush2.bf16.msra.mxu0 0
    %746 = vmatprep.mubr.bf16.mxu0 0
    %747 = vmatmul.mubr.bf16.gmra.mxu0 %v712
    %v748 = vpop.f32.mrf.mxu0
    %v749 = vadd.f32 0.0, %v748
    %v750 = vpop.f32.mrf.mxu0
    %v751 = vpop.f32.mrf.mxu0
    %v752 = vpop.f32.mrf.mxu0
    %753 = vdwg.mxu0
    %v754 = vadd.f32 %v170, %v749
    %v755 = vxor.u32 %v754, 2147483648
    %v756 = vmul.f32 %v755, 1.442695
    %v757 = vpow.pop %v756
    %v758 = vadd.f32 %v757, 1.0
    %v759 = vrcp.pop %v758
    %v760 = vmul.f32 1.0, %v759
    %v761 = vmul.f32 %v760, 2.0
    %v762 = vsub.f32 %v761, 1.0
    %v763 = vmul.f32 %v760, 0.0
    %765 = vrot.lane.b32.xlu0 %v762, 64
    %v766 = vpop.permute.xlu0 %765
    %v768 = vmul.f32 %v760, %v766
    %770 = vrot.lane.b32.xlu0 %v768, 32
    %v771 = vpop.permute.xlu0 %770
    %v773 = vadd.f32 %v763, %v771
    %v774 = vtanh.pop %v773
    %776 = vrot.lane.b32.xlu0 %v774, 64
    %v777 = vpop.permute.xlu0 %776
    %v779 = vmul.f32 %v760, %v777
    %v780 = vpack.c.bf16 %v779, %v779
    %782 = vrot.lane.b32.xlu0 %v780, 32
    %v783 = vpop.permute.xlu0 %782
    %v785 = vsel %vm710, %v783, 0
    %787 = vmatprep.subr.bf16.mxu0 0
    %788 = vmatpush1.bf16.msra.mxu0 0
    %789 = vmatprep.subr.bf16.mxu0 0
    %790 = vmatpush1.bf16.msra.mxu0 0
    %791 = vmatprep.subr.bf16.mxu0 0
    %792 = vmatpush1.bf16.msra.mxu0 0
    %793 = vmatprep.subr.bf16.mxu0 0
    %794 = vmatpush1.bf16.msra.mxu0 0
    %795 = vmatprep.subr.bf16.mxu0 0
    %796 = vmatpush1.bf16.msra.mxu0 0
    %797 = vmatprep.subr.bf16.mxu0 0
    %798 = vmatpush1.bf16.msra.mxu0 0
    %799 = vmatprep.subr.bf16.mxu0 0
    %800 = vmatpush1.bf16.msra.mxu0 %v707
    %801 = vmatprep.subr.bf16.mxu0 0
    %802 = vmatpush1.bf16.msra.mxu0 %v706
    %803 = vmatprep.subr.bf16.mxu0 0
    %804 = vmatpush2.bf16.msra.mxu0 0
    %805 = vmatprep.subr.bf16.mxu0 0
    %806 = vmatpush2.bf16.msra.mxu0 0
    %807 = vmatprep.subr.bf16.mxu0 0
    %808 = vmatpush2.bf16.msra.mxu0 0
    %809 = vmatprep.subr.bf16.mxu0 0
    %810 = vmatpush2.bf16.msra.mxu0 0
    %811 = vmatprep.subr.bf16.mxu0 0
    %812 = vmatpush2.bf16.msra.mxu0 0
    %813 = vmatprep.subr.bf16.mxu0 0
    %814 = vmatpush2.bf16.msra.mxu0 0
    %815 = vmatprep.subr.bf16.mxu0 0
    %816 = vmatpush2.bf16.msra.mxu0 0
    %817 = vmatprep.subr.bf16.mxu0 0
    %818 = vmatpush2.bf16.msra.mxu0 0
    %819 = vmatprep.mubr.bf16.mxu0 0
    %820 = vmatmul.mubr.bf16.gmra.mxu0 %v785
    %v821 = vpop.f32.mrf.mxu0
    %v822 = vadd.f32 0.0, %v821
    %v823 = vpop.f32.mrf.mxu0
    %v824 = vpop.f32.mrf.mxu0
    %v825 = vpop.f32.mrf.mxu0
    %826 = vdwg.mxu0
    %v827 = vadd.f32 %v245, %v822
    %v828 = vxor.u32 %v827, 2147483648
    %v829 = vmul.f32 %v828, 1.442695
    %v830 = vpow.pop %v829
    %v831 = vadd.f32 %v830, 1.0
    %v832 = vrcp.pop %v831
    %v833 = vmul.f32 1.0, %v832
    %v834 = vmul.f32 %v833, 2.0
    %v835 = vsub.f32 %v834, 1.0
    %v836 = vmul.f32 %v833, %v773
    %838 = vrot.lane.b32.xlu0 %v835, 64
    %v839 = vpop.permute.xlu0 %838
    %v841 = vmul.f32 %v833, %v839
    %843 = vrot.lane.b32.xlu0 %v841, 32
    %v844 = vpop.permute.xlu0 %843
    %v846 = vadd.f32 %v836, %v844
    %v847 = vtanh.pop %v846
    %849 = vrot.lane.b32.xlu0 %v847, 64
    %v850 = vpop.permute.xlu0 %849
    %v852 = vmul.f32 %v833, %v850
    %v853 = vpack.c.bf16 %v852, %v852
    %855 = vrot.lane.b32.xlu0 %v853, 32
    %v856 = vpop.permute.xlu0 %855
    %v858 = vsel %vm710, %v856, 0
    %860 = vmatprep.subr.bf16.mxu0 0
    %861 = vmatpush1.bf16.msra.mxu0 0
    %862 = vmatprep.subr.bf16.mxu0 0
    %863 = vmatpush1.bf16.msra.mxu0 0
    %864 = vmatprep.subr.bf16.mxu0 0
    %865 = vmatpush1.bf16.msra.mxu0 0
    %866 = vmatprep.subr.bf16.mxu0 0
    %867 = vmatpush1.bf16.msra.mxu0 0
    %868 = vmatprep.subr.bf16.mxu0 0
    %869 = vmatpush1.bf16.msra.mxu0 0
    %870 = vmatprep.subr.bf16.mxu0 0
    %871 = vmatpush1.bf16.msra.mxu0 0
    %872 = vmatprep.subr.bf16.mxu0 0
    %873 = vmatpush1.bf16.msra.mxu0 %v707
    %874 = vmatprep.subr.bf16.mxu0 0
    %875 = vmatpush1.bf16.msra.mxu0 %v706
    %876 = vmatprep.subr.bf16.mxu0 0
    %877 = vmatpush2.bf16.msra.mxu0 0
    %878 = vmatprep.subr.bf16.mxu0 0
    %879 = vmatpush2.bf16.msra.mxu0 0
    %880 = vmatprep.subr.bf16.mxu0 0
    %881 = vmatpush2.bf16.msra.mxu0 0
    %882 = vmatprep.subr.bf16.mxu0 0
    %883 = vmatpush2.bf16.msra.mxu0 0
    %884 = vmatprep.subr.bf16.mxu0 0
    %885 = vmatpush2.bf16.msra.mxu0 0
    %886 = vmatprep.subr.bf16.mxu0 0
    %887 = vmatpush2.bf16.msra.mxu0 0
    %888 = vmatprep.subr.bf16.mxu0 0
    %889 = vmatpush2.bf16.msra.mxu0 0
    %890 = vmatprep.subr.bf16.mxu0 0
    %891 = vmatpush2.bf16.msra.mxu0 0
    %892 = vmatprep.mubr.bf16.mxu0 0
    %893 = vmatmul.mubr.bf16.gmra.mxu0 %v858
    %v894 = vpop.f32.mrf.mxu0
    %v895 = vadd.f32 0.0, %v894
    %v896 = vpop.f32.mrf.mxu0
    %v897 = vpop.f32.mrf.mxu0
    %v898 = vpop.f32.mrf.mxu0
    %899 = vdwg.mxu0
    %v900 = vadd.f32 %v320, %v895
    %v901 = vxor.u32 %v900, 2147483648
    %v902 = vmul.f32 %v901, 1.442695
    %v903 = vpow.pop %v902
    %v904 = vadd.f32 %v903, 1.0
    %v905 = vrcp.pop %v904
    %v906 = vmul.f32 1.0, %v905
    %v907 = vmul.f32 %v906, 2.0
    %v908 = vsub.f32 %v907, 1.0
    %v909 = vmul.f32 %v906, %v846
    %911 = vrot.lane.b32.xlu0 %v908, 64
    %v912 = vpop.permute.xlu0 %911
    %v914 = vmul.f32 %v906, %v912
    %916 = vrot.lane.b32.xlu0 %v914, 32
    %v917 = vpop.permute.xlu0 %916
    %v919 = vadd.f32 %v909, %v917
    %v920 = vtanh.pop %v919
    %922 = vrot.lane.b32.xlu0 %v920, 64
    %v923 = vpop.permute.xlu0 %922
    %v925 = vmul.f32 %v906, %v923
    %v926 = vpack.c.bf16 %v925, %v925
    %928 = vrot.lane.b32.xlu0 %v926, 32
    %v929 = vpop.permute.xlu0 %928
    %v931 = vsel %vm710, %v929, 0
    %933 = vmatprep.subr.bf16.mxu0 0
    %934 = vmatpush1.bf16.msra.mxu0 0
    %935 = vmatprep.subr.bf16.mxu0 0
    %936 = vmatpush1.bf16.msra.mxu0 0
    %937 = vmatprep.subr.bf16.mxu0 0
    %938 = vmatpush1.bf16.msra.mxu0 0
    %939 = vmatprep.subr.bf16.mxu0 0
    %940 = vmatpush1.bf16.msra.mxu0 0
    %941 = vmatprep.subr.bf16.mxu0 0
    %942 = vmatpush1.bf16.msra.mxu0 0
    %943 = vmatprep.subr.bf16.mxu0 0
    %944 = vmatpush1.bf16.msra.mxu0 0
    %945 = vmatprep.subr.bf16.mxu0 0
    %946 = vmatpush1.bf16.msra.mxu0 %v707
    %947 = vmatprep.subr.bf16.mxu0 0
    %948 = vmatpush1.bf16.msra.mxu0 %v706
    %949 = vmatprep.subr.bf16.mxu0 0
    %950 = vmatpush2.bf16.msra.mxu0 0
    %951 = vmatprep.subr.bf16.mxu0 0
    %952 = vmatpush2.bf16.msra.mxu0 0
    %953 = vmatprep.subr.bf16.mxu0 0
    %954 = vmatpush2.bf16.msra.mxu0 0
    %955 = vmatprep.subr.bf16.mxu0 0
    %956 = vmatpush2.bf16.msra.mxu0 0
    %957 = vmatprep.subr.bf16.mxu0 0
    %958 = vmatpush2.bf16.msra.mxu0 0
    %959 = vmatprep.subr.bf16.mxu0 0
    %960 = vmatpush2.bf16.msra.mxu0 0
    %961 = vmatprep.subr.bf16.mxu0 0
    %962 = vmatpush2.bf16.msra.mxu0 0
    %963 = vmatprep.subr.bf16.mxu0 0
    %964 = vmatpush2.bf16.msra.mxu0 0
    %965 = vmatprep.mubr.bf16.mxu0 0
    %966 = vmatmul.mubr.bf16.gmra.mxu0 %v931
    %v967 = vpop.f32.mrf.mxu0
    %v968 = vadd.f32 0.0, %v967
    %v969 = vpop.f32.mrf.mxu0
    %v970 = vpop.f32.mrf.mxu0
    %v971 = vpop.f32.mrf.mxu0
    %972 = vdwg.mxu0
    %v973 = vadd.f32 %v395, %v968
    %v974 = vxor.u32 %v973, 2147483648
    %v975 = vmul.f32 %v974, 1.442695
    %v976 = vpow.pop %v975
    %v977 = vadd.f32 %v976, 1.0
    %v978 = vrcp.pop %v977
    %v979 = vmul.f32 1.0, %v978
    %v980 = vmul.f32 %v979, 2.0
    %v981 = vsub.f32 %v980, 1.0
    %v982 = vmul.f32 %v979, %v919
    %984 = vrot.lane.b32.xlu0 %v981, 64
    %v985 = vpop.permute.xlu0 %984
    %v987 = vmul.f32 %v979, %v985
    %989 = vrot.lane.b32.xlu0 %v987, 32
    %v990 = vpop.permute.xlu0 %989
    %v992 = vadd.f32 %v982, %v990
    %v993 = vtanh.pop %v992
    %995 = vrot.lane.b32.xlu0 %v993, 64
    %v996 = vpop.permute.xlu0 %995
    %v998 = vmul.f32 %v979, %v996
    %v999 = vpack.c.bf16 %v998, %v998
    %1001 = vrot.lane.b32.xlu0 %v999, 32
    %v1002 = vpop.permute.xlu0 %1001
    %v1004 = vsel %vm710, %v1002, 0
    %1006 = vmatprep.subr.bf16.mxu0 0
    %1007 = vmatpush1.bf16.msra.mxu0 0
    %1008 = vmatprep.subr.bf16.mxu0 0
    %1009 = vmatpush1.bf16.msra.mxu0 0
    %1010 = vmatprep.subr.bf16.mxu0 0
    %1011 = vmatpush1.bf16.msra.mxu0 0
    %1012 = vmatprep.subr.bf16.mxu0 0
    %1013 = vmatpush1.bf16.msra.mxu0 0
    %1014 = vmatprep.subr.bf16.mxu0 0
    %1015 = vmatpush1.bf16.msra.mxu0 0
    %1016 = vmatprep.subr.bf16.mxu0 0
    %1017 = vmatpush1.bf16.msra.mxu0 0
    %1018 = vmatprep.subr.bf16.mxu0 0
    %1019 = vmatpush1.bf16.msra.mxu0 %v707
    %1020 = vmatprep.subr.bf16.mxu0 0
    %1021 = vmatpush1.bf16.msra.mxu0 %v706
    %1022 = vmatprep.subr.bf16.mxu0 0
    %1023 = vmatpush2.bf16.msra.mxu0 0
    %1024 = vmatprep.subr.bf16.mxu0 0
    %1025 = vmatpush2.bf16.msra.mxu0 0
    %1026 = vmatprep.subr.bf16.mxu0 0
    %1027 = vmatpush2.bf16.msra.mxu0 0
    %1028 = vmatprep.subr.bf16.mxu0 0
    %1029 = vmatpush2.bf16.msra.mxu0 0
    %1030 = vmatprep.subr.bf16.mxu0 0
    %1031 = vmatpush2.bf16.msra.mxu0 0
    %1032 = vmatprep.subr.bf16.mxu0 0
    %1033 = vmatpush2.bf16.msra.mxu0 0
    %1034 = vmatprep.subr.bf16.mxu0 0
    %1035 = vmatpush2.bf16.msra.mxu0 0
    %1036 = vmatprep.subr.bf16.mxu0 0
    %1037 = vmatpush2.bf16.msra.mxu0 0
    %1038 = vmatprep.mubr.bf16.mxu0 0
    %1039 = vmatmul.mubr.bf16.gmra.mxu0 %v1004
    %v1040 = vpop.f32.mrf.mxu0
    %v1041 = vadd.f32 0.0, %v1040
    %v1042 = vpop.f32.mrf.mxu0
    %v1043 = vpop.f32.mrf.mxu0
    %v1044 = vpop.f32.mrf.mxu0
    %1045 = vdwg.mxu0
    %v1046 = vadd.f32 %v470, %v1041
    %v1047 = vxor.u32 %v1046, 2147483648
    %v1048 = vmul.f32 %v1047, 1.442695
    %v1049 = vpow.pop %v1048
    %v1050 = vadd.f32 %v1049, 1.0
    %v1051 = vrcp.pop %v1050
    %v1052 = vmul.f32 1.0, %v1051
    %v1053 = vmul.f32 %v1052, 2.0
    %v1054 = vsub.f32 %v1053, 1.0
    %v1055 = vmul.f32 %v1052, %v992
    %1057 = vrot.lane.b32.xlu0 %v1054, 64
    %v1058 = vpop.permute.xlu0 %1057
    %v1060 = vmul.f32 %v1052, %v1058
    %1062 = vrot.lane.b32.xlu0 %v1060, 32
    %v1063 = vpop.permute.xlu0 %1062
    %v1065 = vadd.f32 %v1055, %v1063
    %v1066 = vtanh.pop %v1065
    %1068 = vrot.lane.b32.xlu0 %v1066, 64
    %v1069 = vpop.permute.xlu0 %1068
    %v1071 = vmul.f32 %v1052, %v1069
    %v1072 = vpack.c.bf16 %v1071, %v1071
    %1074 = vrot.lane.b32.xlu0 %v1072, 32
    %v1075 = vpop.permute.xlu0 %1074
    %v1077 = vsel %vm710, %v1075, 0
    %1079 = vmatprep.subr.bf16.mxu0 0
    %1080 = vmatpush1.bf16.msra.mxu0 0
    %1081 = vmatprep.subr.bf16.mxu0 0
    %1082 = vmatpush1.bf16.msra.mxu0 0
    %1083 = vmatprep.subr.bf16.mxu0 0
    %1084 = vmatpush1.bf16.msra.mxu0 0
    %1085 = vmatprep.subr.bf16.mxu0 0
    %1086 = vmatpush1.bf16.msra.mxu0 0
    %1087 = vmatprep.subr.bf16.mxu0 0
    %1088 = vmatpush1.bf16.msra.mxu0 0
    %1089 = vmatprep.subr.bf16.mxu0 0
    %1090 = vmatpush1.bf16.msra.mxu0 0
    %1091 = vmatprep.subr.bf16.mxu0 0
    %1092 = vmatpush1.bf16.msra.mxu0 %v707
    %1093 = vmatprep.subr.bf16.mxu0 0
    %1094 = vmatpush1.bf16.msra.mxu0 %v706
    %1095 = vmatprep.subr.bf16.mxu0 0
    %1096 = vmatpush2.bf16.msra.mxu0 0
    %1097 = vmatprep.subr.bf16.mxu0 0
    %1098 = vmatpush2.bf16.msra.mxu0 0
    %1099 = vmatprep.subr.bf16.mxu0 0
    %1100 = vmatpush2.bf16.msra.mxu0 0
    %1101 = vmatprep.subr.bf16.mxu0 0
    %1102 = vmatpush2.bf16.msra.mxu0 0
    %1103 = vmatprep.subr.bf16.mxu0 0
    %1104 = vmatpush2.bf16.msra.mxu0 0
    %1105 = vmatprep.subr.bf16.mxu0 0
    %1106 = vmatpush2.bf16.msra.mxu0 0
    %1107 = vmatprep.subr.bf16.mxu0 0
    %1108 = vmatpush2.bf16.msra.mxu0 0
    %1109 = vmatprep.subr.bf16.mxu0 0
    %1110 = vmatpush2.bf16.msra.mxu0 0
    %1111 = vmatprep.mubr.bf16.mxu0 0
    %1112 = vmatmul.mubr.bf16.gmra.mxu0 %v1077
    %v1113 = vpop.f32.mrf.mxu0
    %v1114 = vadd.f32 0.0, %v1113
    %v1115 = vpop.f32.mrf.mxu0
    %v1116 = vpop.f32.mrf.mxu0
    %v1117 = vpop.f32.mrf.mxu0
    %1118 = vdwg.mxu0
    %v1119 = vadd.f32 %v545, %v1114
    %v1120 = vxor.u32 %v1119, 2147483648
    %v1121 = vmul.f32 %v1120, 1.442695
    %v1122 = vpow.pop %v1121
    %v1123 = vadd.f32 %v1122, 1.0
    %v1124 = vrcp.pop %v1123
    %v1125 = vmul.f32 1.0, %v1124
    %v1126 = vmul.f32 %v1125, 2.0
    %v1127 = vsub.f32 %v1126, 1.0
    %v1128 = vmul.f32 %v1125, %v1065
    %1130 = vrot.lane.b32.xlu0 %v1127, 64
    %v1131 = vpop.permute.xlu0 %1130
    %v1133 = vmul.f32 %v1125, %v1131
    %1135 = vrot.lane.b32.xlu0 %v1133, 32
    %v1136 = vpop.permute.xlu0 %1135
    %v1138 = vadd.f32 %v1128, %v1136
    %v1139 = vtanh.pop %v1138
    %1141 = vrot.lane.b32.xlu0 %v1139, 64
    %v1142 = vpop.permute.xlu0 %1141
    %v1144 = vmul.f32 %v1125, %v1142
    %v1145 = vpack.c.bf16 %v1144, %v1144
    %1147 = vrot.lane.b32.xlu0 %v1145, 32
    %v1148 = vpop.permute.xlu0 %1147
    %v1150 = vsel %vm710, %v1148, 0
    %1152 = vmatprep.subr.bf16.mxu0 0
    %1153 = vmatpush1.bf16.msra.mxu0 0
    %1154 = vmatprep.subr.bf16.mxu0 0
    %1155 = vmatpush1.bf16.msra.mxu0 0
    %1156 = vmatprep.subr.bf16.mxu0 0
    %1157 = vmatpush1.bf16.msra.mxu0 0
    %1158 = vmatprep.subr.bf16.mxu0 0
    %1159 = vmatpush1.bf16.msra.mxu0 0
    %1160 = vmatprep.subr.bf16.mxu0 0
    %1161 = vmatpush1.bf16.msra.mxu0 0
    %1162 = vmatprep.subr.bf16.mxu0 0
    %1163 = vmatpush1.bf16.msra.mxu0 0
    %1164 = vmatprep.subr.bf16.mxu0 0
    %1165 = vmatpush1.bf16.msra.mxu0 %v707
    %1166 = vmatprep.subr.bf16.mxu0 0
    %1167 = vmatpush1.bf16.msra.mxu0 %v706
    %1168 = vmatprep.subr.bf16.mxu0 0
    %1169 = vmatpush2.bf16.msra.mxu0 0
    %1170 = vmatprep.subr.bf16.mxu0 0
    %1171 = vmatpush2.bf16.msra.mxu0 0
    %1172 = vmatprep.subr.bf16.mxu0 0
    %1173 = vmatpush2.bf16.msra.mxu0 0
    %1174 = vmatprep.subr.bf16.mxu0 0
    %1175 = vmatpush2.bf16.msra.mxu0 0
    %1176 = vmatprep.subr.bf16.mxu0 0
    %1177 = vmatpush2.bf16.msra.mxu0 0
    %1178 = vmatprep.subr.bf16.mxu0 0
    %1179 = vmatpush2.bf16.msra.mxu0 0
    %1180 = vmatprep.subr.bf16.mxu0 0
    %1181 = vmatpush2.bf16.msra.mxu0 0
    %1182 = vmatprep.subr.bf16.mxu0 0
    %1183 = vmatpush2.bf16.msra.mxu0 0
    %1184 = vmatprep.mubr.bf16.mxu0 0
    %1185 = vmatmul.mubr.bf16.gmra.mxu0 %v1150
    %v1186 = vpop.f32.mrf.mxu0
    %v1187 = vadd.f32 0.0, %v1186
    %v1188 = vpop.f32.mrf.mxu0
    %v1189 = vpop.f32.mrf.mxu0
    %v1190 = vpop.f32.mrf.mxu0
    %1191 = vdwg.mxu0
    %v1192 = vadd.f32 %v620, %v1187
    %v1193 = vxor.u32 %v1192, 2147483648
    %v1194 = vmul.f32 %v1193, 1.442695
    %v1195 = vpow.pop %v1194
    %v1196 = vadd.f32 %v1195, 1.0
    %v1197 = vrcp.pop %v1196
    %v1198 = vmul.f32 1.0, %v1197
    %v1199 = vmul.f32 %v1198, 2.0
    %v1200 = vsub.f32 %v1199, 1.0
    %v1201 = vmul.f32 %v1198, %v1138
    %1203 = vrot.lane.b32.xlu0 %v1200, 64
    %v1204 = vpop.permute.xlu0 %1203
    %v1206 = vmul.f32 %v1198, %v1204
    %1208 = vrot.lane.b32.xlu0 %v1206, 32
    %v1209 = vpop.permute.xlu0 %1208
    %v1211 = vadd.f32 %v1201, %v1209
    %v1212 = vtanh.pop %v1211
    %1214 = vrot.lane.b32.xlu0 %v1212, 64
    %v1215 = vpop.permute.xlu0 %1214
    %v1217 = vmul.f32 %v1198, %v1215
    %v1218 = vpack.c.bf16 %v1217, %v1217
    %1220 = vrot.lane.b32.xlu0 %v1218, 32
    %v1221 = vpop.permute.xlu0 %1220
    %v1223 = vsel %vm710, %v1221, 0
    %1225 = vmatprep.subr.bf16.mxu0 0
    %1226 = vmatpush1.bf16.msra.mxu0 0
    %1227 = vmatprep.subr.bf16.mxu0 0
    %1228 = vmatpush1.bf16.msra.mxu0 0
    %1229 = vmatprep.subr.bf16.mxu0 0
    %1230 = vmatpush1.bf16.msra.mxu0 0
    %1231 = vmatprep.subr.bf16.mxu0 0
    %1232 = vmatpush1.bf16.msra.mxu0 0
    %1233 = vmatprep.subr.bf16.mxu0 0
    %1234 = vmatpush1.bf16.msra.mxu0 0
    %1235 = vmatprep.subr.bf16.mxu0 0
    %1236 = vmatpush1.bf16.msra.mxu0 0
    %1237 = vmatprep.subr.bf16.mxu0 0
    %1238 = vmatpush1.bf16.msra.mxu0 %v707
    %1239 = vmatprep.subr.bf16.mxu0 0
    %1240 = vmatpush1.bf16.msra.mxu0 %v706
    %1241 = vmatprep.subr.bf16.mxu0 0
    %1242 = vmatpush2.bf16.msra.mxu0 0
    %1243 = vmatprep.subr.bf16.mxu0 0
    %1244 = vmatpush2.bf16.msra.mxu0 0
    %1245 = vmatprep.subr.bf16.mxu0 0
    %1246 = vmatpush2.bf16.msra.mxu0 0
    %1247 = vmatprep.subr.bf16.mxu0 0
    %1248 = vmatpush2.bf16.msra.mxu0 0
    %1249 = vmatprep.subr.bf16.mxu0 0
    %1250 = vmatpush2.bf16.msra.mxu0 0
    %1251 = vmatprep.subr.bf16.mxu0 0
    %1252 = vmatpush2.bf16.msra.mxu0 0
    %1253 = vmatprep.subr.bf16.mxu0 0
    %1254 = vmatpush2.bf16.msra.mxu0 0
    %1255 = vmatprep.subr.bf16.mxu0 0
    %1256 = vmatpush2.bf16.msra.mxu0 0
    %1257 = vmatprep.mubr.bf16.mxu0 0
    %1258 = vmatmul.mubr.bf16.gmra.mxu0 %v1223
    %v1259 = vpop.f32.mrf.mxu0
    %v1260 = vadd.f32 0.0, %v1259
    %v1261 = vpop.f32.mrf.mxu0
    %v1262 = vpop.f32.mrf.mxu0
    %v1263 = vpop.f32.mrf.mxu0
    %1264 = vdwg.mxu0
    %v1265 = vadd.f32 %v695, %v1260
    %v1266 = vxor.u32 %v1265, 2147483648
    %v1267 = vmul.f32 %v1266, 1.442695
    %v1268 = vpow.pop %v1267
    %v1269 = vadd.f32 %v1268, 1.0
    %v1270 = vrcp.pop %v1269
    %v1271 = vmul.f32 1.0, %v1270
    %v1272 = vmul.f32 %v1271, 2.0
    %v1273 = vsub.f32 %v1272, 1.0
    %v1274 = vmul.f32 %v1271, %v1211
    %1276 = vrot.lane.b32.xlu0 %v1273, 64
    %v1277 = vpop.permute.xlu0 %1276
    %v1279 = vmul.f32 %v1271, %v1277
    %1281 = vrot.lane.b32.xlu0 %v1279, 32
    %v1282 = vpop.permute.xlu0 %1281
    %v1284 = vadd.f32 %v1274, %v1282
    %v1285 = vtanh.pop %v1284
    %1287 = vrot.lane.b32.xlu0 %v1285, 64
    %v1288 = vpop.permute.xlu0 %1287
    %v1290 = vmul.f32 %v1271, %v1288
    %1292 = vrot.lane.b32.xlu0 %v779, 32
    %v1293 = vpop.permute.xlu0 %1292
    %1296 = vrot.lane.b32.xlu0 %v852, 64
    %v1297 = vpop.permute.xlu0 %1296
    %1300 = vrot.lane.b32.xlu0 %v925, 96
    %v1301 = vpop.permute.xlu0 %1300
    %1304 = vrot.lane.b32.xlu0 %v1071, 32
    %v1305 = vpop.permute.xlu0 %1304
    %1308 = vrot.lane.b32.xlu0 %v1144, 64
    %v1309 = vpop.permute.xlu0 %1308
    %1312 = vrot.lane.b32.xlu0 %v1217, 96
    %v1313 = vpop.permute.xlu0 %1312
    %v1315 = vsel %vm710, %v1293, %v1297
    %vm1316 = vcmask 523264
    %v1317 = vsel %vm1316, %v1315, %v1301
    %vm1318 = vcmask 785408
    %v1319 = vsel %vm1318, %v1317, %v998
    %v1320 = vsel %vm710, %v1305, %v1309
    %v1321 = vsel %vm1316, %v1320, %v1313
    %v1322 = vsel %vm1318, %v1321, %v1290
    %v1323 = vld [vmem:[#allocation8] sm:$0xff]
    %v1324 = vld [vmem:[#allocation8 + $0x8] sm:$0xff]
    %v1325 = vld [vmem:[#allocation8 + $0x10] sm:$0xff]
    %v1326 = vld [vmem:[#allocation8 + $0x18] sm:$0xff]
    %v1327 = vld [vmem:[#allocation8 + $0x20] sm:$0xff]
    %v1328 = vld [vmem:[#allocation8 + $0x28] sm:$0xff]
    %v1329 = vld [vmem:[#allocation8 + $0x30] sm:$0xff]
    %v1330 = vld [vmem:[#allocation8 + $0x38] sm:$0xff]
    %v1331 = vld [vmem:[#allocation8 + $0x40] sm:$0xff]
    %v1332 = vld [vmem:[#allocation8 + $0x48] sm:$0xff]
    %v1333 = vld [vmem:[#allocation8 + $0x50] sm:$0xff]
    %v1334 = vld [vmem:[#allocation8 + $0x58] sm:$0xff]
    %v1335 = vld [vmem:[#allocation8 + $0x60] sm:$0xff]
    %v1336 = vld [vmem:[#allocation8 + $0x68] sm:$0xff]
    %v1337 = vld [vmem:[#allocation8 + $0x70] sm:$0xff]
    %v1338 = vld [vmem:[#allocation8 + $0x78] sm:$0xff]
    %v1339 = vld [vmem:[#allocation8 + $0x80] sm:$0xff]
    %v1340 = vld [vmem:[#allocation8 + $0x88] sm:$0xff]
    %v1341 = vld [vmem:[#allocation8 + $0x90] sm:$0xff]
    %v1342 = vld [vmem:[#allocation8 + $0x98] sm:$0xff]
    %v1343 = vld [vmem:[#allocation8 + $0xa0] sm:$0xff]
    %v1344 = vld [vmem:[#allocation8 + $0xa8] sm:$0xff]
    %v1345 = vld [vmem:[#allocation8 + $0xb0] sm:$0xff]
    %v1346 = vld [vmem:[#allocation8 + $0xb8] sm:$0xff]
    %v1347 = vld [vmem:[#allocation8 + $0xc0] sm:$0xff]
    %v1348 = vld [vmem:[#allocation8 + $0xc8] sm:$0xff]
    %v1349 = vld [vmem:[#allocation8 + $0xd0] sm:$0xff]
    %v1350 = vld [vmem:[#allocation8 + $0xd8] sm:$0xff]
    %v1351 = vld [vmem:[#allocation8 + $0xe0] sm:$0xff]
    %v1352 = vld [vmem:[#allocation8 + $0xe8] sm:$0xff]
    %v1353 = vld [vmem:[#allocation8 + $0xf0] sm:$0xff]
    %v1354 = vld [vmem:[#allocation8 + $0xf8] sm:$0xff]
    %v1355 = vld [vmem:[%s5] sm:$0x1]
    %v1357 = vlaneseq
    %v1358 = vshrl.u32 %v1357, 7
    %v1359 = vsub.s32 0, %v1358
    %v1360 = vrot.slane %v1355, %v1359
    %1362 = vmatprep.subr.mxu0 0.0
    %1363 = vmatpush1.msra.mxu0 %v1338
    %1364 = vmatprep.subr.mxu0 0.0
    %1365 = vmatpush1.msra.mxu0 %v1337
    %1366 = vmatprep.subr.mxu0 0.0
    %1367 = vmatpush1.msra.mxu0 %v1336
    %1368 = vmatprep.subr.mxu0 0.0
    %1369 = vmatpush1.msra.mxu0 %v1335
    %1370 = vmatprep.subr.mxu0 0.0
    %1371 = vmatpush1.msra.mxu0 %v1334
    %1372 = vmatprep.subr.mxu0 0.0
    %1373 = vmatpush1.msra.mxu0 %v1333
    %1374 = vmatprep.subr.mxu0 0.0
    %1375 = vmatpush1.msra.mxu0 %v1332
    %1376 = vmatprep.subr.mxu0 0.0
    %1377 = vmatpush1.msra.mxu0 %v1331
    %1378 = vmatprep.subr.mxu0 0.0
    %1379 = vmatpush1.msra.mxu0 %v1330
    %1380 = vmatprep.subr.mxu0 0.0
    %1381 = vmatpush1.msra.mxu0 %v1329
    %1382 = vmatprep.subr.mxu0 0.0
    %1383 = vmatpush1.msra.mxu0 %v1328
    %1384 = vmatprep.subr.mxu0 0.0
    %1385 = vmatpush1.msra.mxu0 %v1327
    %1386 = vmatprep.subr.mxu0 0.0
    %1387 = vmatpush1.msra.mxu0 %v1326
    %1388 = vmatprep.subr.mxu0 0.0
    %1389 = vmatpush1.msra.mxu0 %v1325
    %1390 = vmatprep.subr.mxu0 0.0
    %1391 = vmatpush1.msra.mxu0 %v1324
    %1392 = vmatprep.subr.mxu0 0.0
    %1393 = vmatpush1.msra.mxu0 %v1323
    %1394 = vmatprep.subr.mxu0 0.0
    %1395 = vmatpush2.msra.mxu0 %v1354
    %1396 = vmatprep.subr.mxu0 0.0
    %1397 = vmatpush2.msra.mxu0 %v1353
    %1398 = vmatprep.subr.mxu0 0.0
    %1399 = vmatpush2.msra.mxu0 %v1352
    %1400 = vmatprep.subr.mxu0 0.0
    %1401 = vmatpush2.msra.mxu0 %v1351
    %1402 = vmatprep.subr.mxu0 0.0
    %1403 = vmatpush2.msra.mxu0 %v1350
    %1404 = vmatprep.subr.mxu0 0.0
    %1405 = vmatpush2.msra.mxu0 %v1349
    %1406 = vmatprep.subr.mxu0 0.0
    %1407 = vmatpush2.msra.mxu0 %v1348
    %1408 = vmatprep.subr.mxu0 0.0
    %1409 = vmatpush2.msra.mxu0 %v1347
    %1410 = vmatprep.subr.mxu0 0.0
    %1411 = vmatpush2.msra.mxu0 %v1346
    %1412 = vmatprep.subr.mxu0 0.0
    %1413 = vmatpush2.msra.mxu0 %v1345
    %1414 = vmatprep.subr.mxu0 0.0
    %1415 = vmatpush2.msra.mxu0 %v1344
    %1416 = vmatprep.subr.mxu0 0.0
    %1417 = vmatpush2.msra.mxu0 %v1343
    %1418 = vmatprep.subr.mxu0 0.0
    %1419 = vmatpush2.msra.mxu0 %v1342
    %1420 = vmatprep.subr.mxu0 0.0
    %1421 = vmatpush2.msra.mxu0 %v1341
    %1422 = vmatprep.subr.mxu0 0.0
    %1423 = vmatpush2.msra.mxu0 %v1340
    %1424 = vmatprep.subr.mxu0 0.0
    %1425 = vmatpush2.msra.mxu0 %v1339
    %1426 = vmatprep.mubr.f32.mxu0 %v1322
    %1427 = vmatmul.mubr.f32.gmra.mxu0 %v1319
    %v1428 = vpop.f32.mrf.mxu0
    %v1429 = vadd.f32 %v1360, %v1428
    %v1430 = vpop.f32.mrf.mxu0
    %1431 = vdwg.mxu0
    %1432 = vst [vmem:[#allocation10] sm:$0x3] %v1429
    // Predicated region
    $region42: #{tpu_custom_call.1} parent=1 // pred_check
      _
    $region43: #{tpu_custom_call.1} parent=1 // pred_check_branch
      %1434 = sbr.rel (0) target = $region45
    $region44: #{tpu_custom_call.1} parent=1 // pred_region
      %s1436 = ssub.s32 32, 32
      %1437 = vsyncadd [#allocation4], %s1436
      %s1439 = sshll.u32 [#allocation10], 4
      %s1440 = int_to_ptr.vmem [resolvable:$true] %s1439
      %1442 = dma.vmem_to_hbm [thread:$0]  %s1440, 32, %s6, [#allocation4]
    $region45: #{tpu_custom_call.1} parent=1 // pred_fallthru
      _
    // Predicated region
    $region46: #{tpu_custom_call.1} parent=1 // pred_check
      _
    $region47: #{tpu_custom_call.1} parent=1 // pred_check_branch
      %1444 = sbr.rel (0) target = $region49
    $region48: #{tpu_custom_call.1} parent=1 // pred_region
      %1445 = dma.done [#allocation4], 32
    $region49: #{tpu_custom_call.1} parent=1 // pred_fallthru
      _
    %1446 = vsyncpa [#allocation3], 1
    %1447 = vsyncpa [#allocation6], 1
    %1448 = vsyncpa [#allocation9], 1
    %1449 = vsyncpa [#allocation4], 1

</llo_original>
